<compile_context>
chip_gen: v7x
topology: tpu7x:2x2x1
jax: 0.10.0
libtpu: 0.0.40
codegen_flags: <defaults>
</compile_context>

<pallas_src>
import jax
import jax.numpy as jnp
from jax import lax
from jax.experimental import pallas as pl
from jax.experimental.pallas import tpu as pltpu


def _vmem_capacity_bytes():
    """Per-TC VMEM capacity, with a conservative fallback (v7x = 64 MiB)."""
    try:
        cap = getattr(pltpu.get_tpu_info(), "vmem_capacity_bytes", None)
        if cap:
            return int(cap)
    except Exception:
        pass
    return 64 * 1024 * 1024


def _pick_b_tile(N, C, HW, vmem_cap):
    """Largest B_TILE that (a) divides N, (b) fits a VMEM budget, (c) keeps >=2 grid steps."""
    budget = int(0.4 * vmem_cap)                      # headroom for params/compiler scratch
    # per image: double-buffered f32 x block + double-buffered f32 out block + bf16 im2col
    per_img = 2 * (4 * C * HW) + 2 * (4 * C * HW) + 2 * 9 * C * HW   # ~34*C*HW bytes
    max_b = max(1, budget // per_img)
    if N > 1:
        max_b = min(max_b, max(1, N // 2))            # keep >= 2 grid steps (v7x 2-TC sharding)
    b = 1
    for d in range(1, min(N, max_b) + 1):
        if N % d == 0:
            b = d
    return b


def _make_kernel(*, H, W, C, G, B, eps, use_elu, use_scratch):
    HW = H * W
    Cg = C // G
    inv_cnt = 1.0 / float(Cg * HW)
    # flat source offsets of the 3x3 taps (ky-major, matching the folded weight layout)
    tap_offs = [(ky - 1) * W + (kx - 1) for ky in range(3) for kx in range(3)]

    def kernel(x_ref, w_ref, b_ref, gamma_ref, beta_ref, mask_ref, *rest):
        rest = list(rest)
        prelu = None
        if not use_elu:
            prelu = rest.pop(0)[...]                          # (C, 1) f32
        o_ref = rest.pop(0)
        col_ref = rest.pop(0) if use_scratch else None

        # ---- im2col: 9 lane-rolled, masked, bf16 taps per image -------------------
        def taps_for_image(bi):
            xf = x_ref[bi]                                    # (C, HW) f32
            taps = []
            for t, d in enumerate(tap_offs):
                if d == 0:
                    shifted = xf
                else:
                    # numpy-roll semantics: shifted[p] = xf[(p + d) mod HW]
                    shifted = pltpu.roll(xf, shift=(-d) % HW, axis=1)
                tap = shifted.astype(jnp.bfloat16)
                if t != 4:                                    # center tap: mask is all-ones
                    tap = tap * mask_ref[pl.ds(t, 1), :]      # bf16 mask zeroes the halo
                taps.append(tap)
            return taps

        if use_scratch:
            for bi in range(B):
                taps = taps_for_image(bi)
                for t in range(9):
                    col_ref[pl.ds(t * C, C), pl.ds(bi * HW, HW)] = taps[t]
            rhs = col_ref[...]                                # (9C, B*HW) bf16
        else:
            cols = [jnp.concatenate(taps_for_image(bi), axis=0) for bi in range(B)]
            rhs = cols[0] if B == 1 else jnp.concatenate(cols, axis=1)  # (9C, B*HW) bf16

        # ---- Conv2d(C,C,3,pad=1) over the whole batch tile: single MXU matmul -----
        acc = jnp.dot(w_ref[...], rhs, preferred_element_type=jnp.float32)  # (C, B*HW) f32
        acc = acc + b_ref[...]                                # conv bias (C, 1)

        gam = gamma_ref[...]                                  # (C, 1)
        bet = beta_ref[...]                                   # (C, 1)

        # ---- GroupNorm(G, C) + activation, per image (stats are per sample) -------
        for bi in range(B):
            blk = acc[:, bi * HW:(bi + 1) * HW]               # (C, HW)
            rs = jnp.sum(blk, axis=1, keepdims=True)          # (C, 1)   lane reduction
            rss = jnp.sum(blk * blk, axis=1, keepdims=True)   # (C, 1)   one-pass sumsq
            a_parts, s_parts = [], []
            for g in range(G):
                lo, hi = g * Cg, (g + 1) * Cg
                s = jnp.sum(rs[lo:hi, :], axis=0, keepdims=True)    # (1, 1)
                ss = jnp.sum(rss[lo:hi, :], axis=0, keepdims=True)  # (1, 1)
                mean = s * inv_cnt
                var = ss * inv_cnt - mean * mean              # E[x^2] - mean^2 (one-pass)
                inv = lax.rsqrt(var + eps)
                a_g = gam[lo:hi, :] * inv                     # folded scale  (Cg, 1)
                a_parts.append(a_g)
                s_parts.append(bet[lo:hi, :] - mean * a_g)    # folded shift  (Cg, 1)
            a_ch = jnp.concatenate(a_parts, axis=0)           # (C, 1)
            s_ch = jnp.concatenate(s_parts, axis=0)           # (C, 1)
            y = blk * a_ch + s_ch                             # 2 VALU ops per element
            if use_elu:
                # exp(y)-1 kept (expm1 lowering not universally available in Mosaic);
                # accuracy delta near 0 is far below the test tolerance.
                y = jnp.where(y > 0, y, jnp.exp(y) - 1.0)     # ELU(alpha=1)
            else:
                y = jnp.where(y > 0, y, prelu * y)            # PReLU(nchan)
            o_ref[bi] = y.astype(o_ref.dtype)                 # one lane-dense (C, HW) store

    return kernel


def luconv2d(x_nchw, conv_w, conv_b, gn_gamma, gn_beta, prelu_w=None, *,
             num_groups=8, eps=1e-5, elu=True):
    N, C, H, W = x_nchw.shape
    assert C % num_groups == 0, "GroupNorm(8, C) requires C % 8 == 0"
    assert conv_w.shape == (C, C, 3, 3), "roll+mask halo scheme is 3x3/pad=1 specific"
    HW = H * W

    x = x_nchw.astype(jnp.float32).reshape(N, C, HW)          # free reshape (no HBM shuffle)

    # conv weight (Cout, Cin, 3, 3) -> (Cout, ky, kx, Cin) -> (Cout, 9*Cin), bf16 for MXU
    w = jnp.transpose(conv_w, (0, 2, 3, 1)).reshape(C, 9 * C).astype(jnp.bfloat16)

    # per-tap validity masks for the flattened H*W lane rolls (in-kernel halo handling)
    hh = jnp.arange(HW, dtype=jnp.int32) // W
    ww = jnp.arange(HW, dtype=jnp.int32) % W
    masks = []
    for ky in range(3):
        for kx in range(3):
            oy, ox = ky - 1, kx - 1
            masks.append((hh + oy >= 0) & (hh + oy < H) & (ww + ox >= 0) & (ww + ox < W))
    mask = jnp.stack(masks, axis=0).astype(jnp.bfloat16)      # (9, HW), exact {0,1} in bf16

    b = conv_b.reshape(C, 1).astype(jnp.float32)
    gamma = gn_gamma.reshape(C, 1).astype(jnp.float32)
    beta = gn_beta.reshape(C, 1).astype(jnp.float32)

    vmem_cap = _vmem_capacity_bytes()
    B_TILE = _pick_b_tile(N, C, HW, vmem_cap)
    # small RHS: build it as a value (no scratch round-trip); large RHS: VMEM scratch
    use_scratch = (2 * 9 * C * B_TILE * HW) > (512 * 1024)

    kernel = _make_kernel(H=H, W=W, C=C, G=num_groups, B=B_TILE, eps=eps,
                          use_elu=elu, use_scratch=use_scratch)

    small_spec = pl.BlockSpec((C, 1), lambda n: (0, 0))
    in_specs = [
        pl.BlockSpec((B_TILE, C, HW), lambda n: (n, 0, 0)),   # x
        pl.BlockSpec((C, 9 * C), lambda n: (0, 0)),           # folded conv weight
        small_spec,                                           # conv bias
        small_spec,                                           # gamma
        small_spec,                                           # beta
        pl.BlockSpec((9, HW), lambda n: (0, 0)),              # tap masks (bf16)
    ]
    args = [x, w, b, gamma, beta, mask]
    if not elu:
        assert prelu_w is not None
        in_specs.append(small_spec)
        args.append(prelu_w.reshape(C, 1).astype(jnp.float32))

    scratch = [pltpu.VMEM((9 * C, B_TILE * HW), jnp.bfloat16)] if use_scratch else []

    # VMEM budget derived from the actual tile sizes, capped below the chip capacity
    x_blk = 4 * B_TILE * C * HW
    out_blk = 4 * B_TILE * C * HW
    col_blk = 2 * 9 * C * B_TILE * HW
    params = 2 * C * 9 * C + 2 * 9 * HW + 4 * 4 * C
    need = 2 * x_blk + 2 * out_blk + 2 * col_blk + params
    vmem_limit = int(min(int(0.75 * vmem_cap), max(8 * 1024 * 1024, 2 * need)))

    cost = pl.CostEstimate(
        flops=2 * N * HW * C * 9 * C + 10 * N * C * HW,
        transcendentals=(N * C * HW if elu else 0),
        bytes_accessed=2 * 4 * N * C * HW + 2 * 9 * C * C + 2 * 9 * HW,
    )

    out = pl.pallas_call(
        kernel,
        out_shape=jax.ShapeDtypeStruct((N, C, HW), jnp.float32),
        grid_spec=pltpu.PrefetchScalarGridSpec(
            num_scalar_prefetch=0,
            grid=(N // B_TILE,),
            in_specs=in_specs,
            out_specs=pl.BlockSpec((B_TILE, C, HW), lambda n: (n, 0, 0)),
            scratch_shapes=scratch,
        ),
        compiler_params=pltpu.CompilerParams(
            dimension_semantics=("parallel",),
            vmem_limit_bytes=vmem_limit,
        ),
        cost_estimate=cost,
    )(*args)
    return out.reshape(N, C, H, W)                            # free reshape back to NCHW


def _reference(x, conv_w, conv_b, gamma, beta, prelu, *, num_groups=8, eps=1e-5, elu=True):
    # Conv inputs quantized to bf16 (same as the kernel's MXU path), f32 accumulation.
    y = lax.conv_general_dilated(
        x.astype(jnp.bfloat16), conv_w.astype(jnp.bfloat16), (1, 1), "SAME",
        dimension_numbers=("NCHW", "OIHW", "NCHW"),
        preferred_element_type=jnp.float32)
    y = y + conv_b[None, :, None, None]
    N, C, H, W = y.shape
    yg = y.reshape(N, num_groups, C // num_groups, H, W)
    mean = yg.mean(axis=(2, 3, 4), keepdims=True)
    var = yg.var(axis=(2, 3, 4), keepdims=True)
    yn = ((yg - mean) / jnp.sqrt(var + eps)).reshape(N, C, H, W)
    yn = yn * gamma[None, :, None, None] + beta[None, :, None, None]
    if elu:
        return jnp.where(yn > 0, yn, jnp.exp(yn) - 1.0)       # ELU(alpha=1)
    return jnp.where(yn > 0, yn, prelu[None, :, None, None] * yn)


if __name__ == "__main__":
    key = jax.random.PRNGKey(0)
    kx, kw, kb, kg, kbt, kp = jax.random.split(key, 6)

    # N=4 so the batched path is exercised (B_TILE=2, grid of 2 steps);
    # nchan must be divisible by 8 for GroupNorm(8, C).
    N, C, H, W = 4, 16, 16, 16
    x = jax.random.normal(kx, (N, C, H, W), jnp.float32)
    conv_w = jax.random.normal(kw, (C, C, 3, 3), jnp.float32) * 0.1
    conv_b = jax.random.normal(kb, (C,), jnp.float32) * 0.1
    gn_gamma = 1.0 + 0.1 * jax.random.normal(kg, (C,), jnp.float32)
    gn_beta = 0.1 * jax.random.normal(kbt, (C,), jnp.float32)
    prelu_w = 0.25 + 0.01 * jax.random.normal(kp, (C,), jnp.float32)

    # ELU branch (prelu operand is dropped from the kernel's argument list)
    out_elu = jax.block_until_ready(
        luconv2d(x, conv_w, conv_b, gn_gamma, gn_beta, elu=True))
    ref_elu = _reference(x, conv_w, conv_b, gn_gamma, gn_beta, prelu_w, elu=True)
    assert out_elu.shape == (N, C, H, W)
    err = float(jnp.max(jnp.abs(out_elu - ref_elu)))
    assert jnp.allclose(out_elu, ref_elu, atol=2e-3, rtol=2e-3), err

    # PReLU branch
    out_pr = jax.block_until_ready(
        luconv2d(x, conv_w, conv_b, gn_gamma, gn_beta, prelu_w, elu=False))
    ref_pr = _reference(x, conv_w, conv_b, gn_gamma, gn_beta, prelu_w, elu=False)
    err = float(jnp.max(jnp.abs(out_pr - ref_pr)))
    assert jnp.allclose(out_pr, ref_pr, atol=2e-3, rtol=2e-3), err

    print("KERNEL_OK")
</pallas_src>

<mosaic_0001>
module attributes {stable_mosaic.version = 11 : i64} {
  func.func @kernel(%arg0: i32, %arg1: memref<2x16x256xf32, #tpu.memory_space<vmem>>, %arg2: memref<16x144xbf16, #tpu.memory_space<vmem>>, %arg3: memref<16x1xf32, #tpu.memory_space<vmem>>, %arg4: memref<16x1xf32, #tpu.memory_space<vmem>>, %arg5: memref<16x1xf32, #tpu.memory_space<vmem>>, %arg6: memref<9x256xbf16, #tpu.memory_space<vmem>>, %arg7: memref<2x16x256xf32, #tpu.memory_space<vmem>>) attributes {dimension_semantics = [#tpu.dimension_semantics<parallel>], iteration_bounds = array<i64: 2>, scalar_prefetch = 0 : i64, scratch_operands = 0 : i64, tpu.core_type = #tpu.core_type<tc>, window_params = [{transform_indices = @transform_0, window_bounds = array<i64: 2, 16, 256>}, {pipeline_mode = #tpu.pipeline_mode<synchronous>, transform_indices = @transform_1, window_bounds = array<i64: 16, 144>}, {pipeline_mode = #tpu.pipeline_mode<synchronous>, transform_indices = @transform_2, window_bounds = array<i64: 16, 1>}, {pipeline_mode = #tpu.pipeline_mode<synchronous>, transform_indices = @transform_3, window_bounds = array<i64: 16, 1>}, {pipeline_mode = #tpu.pipeline_mode<synchronous>, transform_indices = @transform_4, window_bounds = array<i64: 16, 1>}, {pipeline_mode = #tpu.pipeline_mode<synchronous>, transform_indices = @transform_5, window_bounds = array<i64: 9, 256>}, {transform_indices = @transform_6, window_bounds = array<i64: 2, 16, 256>}]} {
    %c0 = arith.constant 0 : index
    %c0_0 = arith.constant 0 : index
    %c0_1 = arith.constant 0 : index
    %0 = vector.load %arg1[%c0, %c0_0, %c0_1] : memref<2x16x256xf32, #tpu.memory_space<vmem>>, vector<1x16x256xf32>
    %1 = vector.shape_cast %0 : vector<1x16x256xf32> to vector<16x256xf32>
    %c17_i32 = arith.constant 17 : i32
    %2 = tpu.dynamic_rotate %1 by %c17_i32 dim 1 : vector<16x256xf32>, i32 -> vector<16x256xf32>
    %3 = arith.truncf %2 : vector<16x256xf32> to vector<16x256xbf16>
    %c0_2 = arith.constant 0 : index
    %c0_3 = arith.constant 0 : index
    %4 = vector.load %arg6[%c0_2, %c0_3] : memref<9x256xbf16, #tpu.memory_space<vmem>>, vector<1x256xbf16>
    %5 = vector.broadcast %4 : vector<1x256xbf16> to vector<16x256xbf16>
    %6 = arith.mulf %3, %5 : vector<16x256xbf16>
    %c16_i32 = arith.constant 16 : i32
    %7 = tpu.dynamic_rotate %1 by %c16_i32 dim 1 : vector<16x256xf32>, i32 -> vector<16x256xf32>
    %8 = arith.truncf %7 : vector<16x256xf32> to vector<16x256xbf16>
    %c1 = arith.constant 1 : index
    %c0_4 = arith.constant 0 : index
    %9 = vector.load %arg6[%c1, %c0_4] : memref<9x256xbf16, #tpu.memory_space<vmem>>, vector<1x256xbf16>
    %10 = vector.broadcast %9 : vector<1x256xbf16> to vector<16x256xbf16>
    %11 = arith.mulf %8, %10 : vector<16x256xbf16>
    %c15_i32 = arith.constant 15 : i32
    %12 = tpu.dynamic_rotate %1 by %c15_i32 dim 1 : vector<16x256xf32>, i32 -> vector<16x256xf32>
    %13 = arith.truncf %12 : vector<16x256xf32> to vector<16x256xbf16>
    %c2 = arith.constant 2 : index
    %c0_5 = arith.constant 0 : index
    %14 = vector.load %arg6[%c2, %c0_5] : memref<9x256xbf16, #tpu.memory_space<vmem>>, vector<1x256xbf16>
    %15 = vector.broadcast %14 : vector<1x256xbf16> to vector<16x256xbf16>
    %16 = arith.mulf %13, %15 : vector<16x256xbf16>
    %c1_i32 = arith.constant 1 : i32
    %17 = tpu.dynamic_rotate %1 by %c1_i32 dim 1 : vector<16x256xf32>, i32 -> vector<16x256xf32>
    %18 = arith.truncf %17 : vector<16x256xf32> to vector<16x256xbf16>
    %c3 = arith.constant 3 : index
    %c0_6 = arith.constant 0 : index
    %19 = vector.load %arg6[%c3, %c0_6] : memref<9x256xbf16, #tpu.memory_space<vmem>>, vector<1x256xbf16>
    %20 = vector.broadcast %19 : vector<1x256xbf16> to vector<16x256xbf16>
    %21 = arith.mulf %18, %20 : vector<16x256xbf16>
    %22 = arith.truncf %1 : vector<16x256xf32> to vector<16x256xbf16>
    %c255_i32 = arith.constant 255 : i32
    %23 = tpu.dynamic_rotate %1 by %c255_i32 dim 1 : vector<16x256xf32>, i32 -> vector<16x256xf32>
    %24 = arith.truncf %23 : vector<16x256xf32> to vector<16x256xbf16>
    %c5 = arith.constant 5 : index
    %c0_7 = arith.constant 0 : index
    %25 = vector.load %arg6[%c5, %c0_7] : memref<9x256xbf16, #tpu.memory_space<vmem>>, vector<1x256xbf16>
    %26 = vector.broadcast %25 : vector<1x256xbf16> to vector<16x256xbf16>
    %27 = arith.mulf %24, %26 : vector<16x256xbf16>
    %c241_i32 = arith.constant 241 : i32
    %28 = tpu.dynamic_rotate %1 by %c241_i32 dim 1 : vector<16x256xf32>, i32 -> vector<16x256xf32>
    %29 = arith.truncf %28 : vector<16x256xf32> to vector<16x256xbf16>
    %c6 = arith.constant 6 : index
    %c0_8 = arith.constant 0 : index
    %30 = vector.load %arg6[%c6, %c0_8] : memref<9x256xbf16, #tpu.memory_space<vmem>>, vector<1x256xbf16>
    %31 = vector.broadcast %30 : vector<1x256xbf16> to vector<16x256xbf16>
    %32 = arith.mulf %29, %31 : vector<16x256xbf16>
    %c240_i32 = arith.constant 240 : i32
    %33 = tpu.dynamic_rotate %1 by %c240_i32 dim 1 : vector<16x256xf32>, i32 -> vector<16x256xf32>
    %34 = arith.truncf %33 : vector<16x256xf32> to vector<16x256xbf16>
    %c7 = arith.constant 7 : index
    %c0_9 = arith.constant 0 : index
    %35 = vector.load %arg6[%c7, %c0_9] : memref<9x256xbf16, #tpu.memory_space<vmem>>, vector<1x256xbf16>
    %36 = vector.broadcast %35 : vector<1x256xbf16> to vector<16x256xbf16>
    %37 = arith.mulf %34, %36 : vector<16x256xbf16>
    %c239_i32 = arith.constant 239 : i32
    %38 = tpu.dynamic_rotate %1 by %c239_i32 dim 1 : vector<16x256xf32>, i32 -> vector<16x256xf32>
    %39 = arith.truncf %38 : vector<16x256xf32> to vector<16x256xbf16>
    %c8 = arith.constant 8 : index
    %c0_10 = arith.constant 0 : index
    %40 = vector.load %arg6[%c8, %c0_10] : memref<9x256xbf16, #tpu.memory_space<vmem>>, vector<1x256xbf16>
    %41 = vector.broadcast %40 : vector<1x256xbf16> to vector<16x256xbf16>
    %42 = arith.mulf %39, %41 : vector<16x256xbf16>
    %43 = tpu.concatenate %6, %11, %16, %21, %22, %27, %32, %37, %42 in 0 : vector<16x256xbf16>, vector<16x256xbf16>, vector<16x256xbf16>, vector<16x256xbf16>, vector<16x256xbf16>, vector<16x256xbf16>, vector<16x256xbf16>, vector<16x256xbf16>, vector<16x256xbf16> -> vector<144x256xbf16>
    %c1_11 = arith.constant 1 : index
    %c0_12 = arith.constant 0 : index
    %c0_13 = arith.constant 0 : index
    %44 = vector.load %arg1[%c1_11, %c0_12, %c0_13] : memref<2x16x256xf32, #tpu.memory_space<vmem>>, vector<1x16x256xf32>
    %45 = vector.shape_cast %44 : vector<1x16x256xf32> to vector<16x256xf32>
    %c17_i32_14 = arith.constant 17 : i32
    %46 = tpu.dynamic_rotate %45 by %c17_i32_14 dim 1 : vector<16x256xf32>, i32 -> vector<16x256xf32>
    %47 = arith.truncf %46 : vector<16x256xf32> to vector<16x256xbf16>
    %c0_15 = arith.constant 0 : index
    %c0_16 = arith.constant 0 : index
    %48 = vector.load %arg6[%c0_15, %c0_16] : memref<9x256xbf16, #tpu.memory_space<vmem>>, vector<1x256xbf16>
    %49 = vector.broadcast %48 : vector<1x256xbf16> to vector<16x256xbf16>
    %50 = arith.mulf %47, %49 : vector<16x256xbf16>
    %c16_i32_17 = arith.constant 16 : i32
    %51 = tpu.dynamic_rotate %45 by %c16_i32_17 dim 1 : vector<16x256xf32>, i32 -> vector<16x256xf32>
    %52 = arith.truncf %51 : vector<16x256xf32> to vector<16x256xbf16>
    %c1_18 = arith.constant 1 : index
    %c0_19 = arith.constant 0 : index
    %53 = vector.load %arg6[%c1_18, %c0_19] : memref<9x256xbf16, #tpu.memory_space<vmem>>, vector<1x256xbf16>
    %54 = vector.broadcast %53 : vector<1x256xbf16> to vector<16x256xbf16>
    %55 = arith.mulf %52, %54 : vector<16x256xbf16>
    %c15_i32_20 = arith.constant 15 : i32
    %56 = tpu.dynamic_rotate %45 by %c15_i32_20 dim 1 : vector<16x256xf32>, i32 -> vector<16x256xf32>
    %57 = arith.truncf %56 : vector<16x256xf32> to vector<16x256xbf16>
    %c2_21 = arith.constant 2 : index
    %c0_22 = arith.constant 0 : index
    %58 = vector.load %arg6[%c2_21, %c0_22] : memref<9x256xbf16, #tpu.memory_space<vmem>>, vector<1x256xbf16>
    %59 = vector.broadcast %58 : vector<1x256xbf16> to vector<16x256xbf16>
    %60 = arith.mulf %57, %59 : vector<16x256xbf16>
    %c1_i32_23 = arith.constant 1 : i32
    %61 = tpu.dynamic_rotate %45 by %c1_i32_23 dim 1 : vector<16x256xf32>, i32 -> vector<16x256xf32>
    %62 = arith.truncf %61 : vector<16x256xf32> to vector<16x256xbf16>
    %c3_24 = arith.constant 3 : index
    %c0_25 = arith.constant 0 : index
    %63 = vector.load %arg6[%c3_24, %c0_25] : memref<9x256xbf16, #tpu.memory_space<vmem>>, vector<1x256xbf16>
    %64 = vector.broadcast %63 : vector<1x256xbf16> to vector<16x256xbf16>
    %65 = arith.mulf %62, %64 : vector<16x256xbf16>
    %66 = arith.truncf %45 : vector<16x256xf32> to vector<16x256xbf16>
    %c255_i32_26 = arith.constant 255 : i32
    %67 = tpu.dynamic_rotate %45 by %c255_i32_26 dim 1 : vector<16x256xf32>, i32 -> vector<16x256xf32>
    %68 = arith.truncf %67 : vector<16x256xf32> to vector<16x256xbf16>
    %c5_27 = arith.constant 5 : index
    %c0_28 = arith.constant 0 : index
    %69 = vector.load %arg6[%c5_27, %c0_28] : memref<9x256xbf16, #tpu.memory_space<vmem>>, vector<1x256xbf16>
    %70 = vector.broadcast %69 : vector<1x256xbf16> to vector<16x256xbf16>
    %71 = arith.mulf %68, %70 : vector<16x256xbf16>
    %c241_i32_29 = arith.constant 241 : i32
    %72 = tpu.dynamic_rotate %45 by %c241_i32_29 dim 1 : vector<16x256xf32>, i32 -> vector<16x256xf32>
    %73 = arith.truncf %72 : vector<16x256xf32> to vector<16x256xbf16>
    %c6_30 = arith.constant 6 : index
    %c0_31 = arith.constant 0 : index
    %74 = vector.load %arg6[%c6_30, %c0_31] : memref<9x256xbf16, #tpu.memory_space<vmem>>, vector<1x256xbf16>
    %75 = vector.broadcast %74 : vector<1x256xbf16> to vector<16x256xbf16>
    %76 = arith.mulf %73, %75 : vector<16x256xbf16>
    %c240_i32_32 = arith.constant 240 : i32
    %77 = tpu.dynamic_rotate %45 by %c240_i32_32 dim 1 : vector<16x256xf32>, i32 -> vector<16x256xf32>
    %78 = arith.truncf %77 : vector<16x256xf32> to vector<16x256xbf16>
    %c7_33 = arith.constant 7 : index
    %c0_34 = arith.constant 0 : index
    %79 = vector.load %arg6[%c7_33, %c0_34] : memref<9x256xbf16, #tpu.memory_space<vmem>>, vector<1x256xbf16>
    %80 = vector.broadcast %79 : vector<1x256xbf16> to vector<16x256xbf16>
    %81 = arith.mulf %78, %80 : vector<16x256xbf16>
    %c239_i32_35 = arith.constant 239 : i32
    %82 = tpu.dynamic_rotate %45 by %c239_i32_35 dim 1 : vector<16x256xf32>, i32 -> vector<16x256xf32>
    %83 = arith.truncf %82 : vector<16x256xf32> to vector<16x256xbf16>
    %c8_36 = arith.constant 8 : index
    %c0_37 = arith.constant 0 : index
    %84 = vector.load %arg6[%c8_36, %c0_37] : memref<9x256xbf16, #tpu.memory_space<vmem>>, vector<1x256xbf16>
    %85 = vector.broadcast %84 : vector<1x256xbf16> to vector<16x256xbf16>
    %86 = arith.mulf %83, %85 : vector<16x256xbf16>
    %87 = tpu.concatenate %50, %55, %60, %65, %66, %71, %76, %81, %86 in 0 : vector<16x256xbf16>, vector<16x256xbf16>, vector<16x256xbf16>, vector<16x256xbf16>, vector<16x256xbf16>, vector<16x256xbf16>, vector<16x256xbf16>, vector<16x256xbf16>, vector<16x256xbf16> -> vector<144x256xbf16>
    %88 = tpu.concatenate %43, %87 in 1 : vector<144x256xbf16>, vector<144x256xbf16> -> vector<144x512xbf16>
    %c0_38 = arith.constant 0 : index
    %c0_39 = arith.constant 0 : index
    %89 = vector.load %arg2[%c0_38, %c0_39] : memref<16x144xbf16, #tpu.memory_space<vmem>>, vector<16x144xbf16>
    %cst = arith.constant dense<0.000000e+00> : vector<16x512xf32>
    %90 = tpu.matmul %89, %88, %cst {dimension_numbers = #tpu.dot_dimension_numbers<[1], [0], [0], [1], [0, 0, 1, 1], [], []>} : vector<16x144xbf16>, vector<144x512xbf16>, vector<16x512xf32> -> vector<16x512xf32>
    %c0_40 = arith.constant 0 : index
    %c0_41 = arith.constant 0 : index
    %91 = vector.load %arg3[%c0_40, %c0_41] : memref<16x1xf32, #tpu.memory_space<vmem>>, vector<16x1xf32>
    %92 = vector.broadcast %91 : vector<16x1xf32> to vector<16x512xf32>
    %93 = arith.addf %90, %92 : vector<16x512xf32>
    %c0_42 = arith.constant 0 : index
    %c0_43 = arith.constant 0 : index
    %94 = vector.load %arg4[%c0_42, %c0_43] : memref<16x1xf32, #tpu.memory_space<vmem>>, vector<16x1xf32>
    %c0_44 = arith.constant 0 : index
    %c0_45 = arith.constant 0 : index
    %95 = vector.load %arg5[%c0_44, %c0_45] : memref<16x1xf32, #tpu.memory_space<vmem>>, vector<16x1xf32>
    %96 = vector.extract_strided_slice %93 {offsets = [0, 0], sizes = [16, 256], strides = [1, 1]} : vector<16x512xf32> to vector<16x256xf32>
    %cst_46 = arith.constant dense<0.000000e+00> : vector<16xf32>
    %97 = vector.multi_reduction <add>, %96, %cst_46 [1] : vector<16x256xf32> to vector<16xf32>
    %98 = vector.shape_cast %97 : vector<16xf32> to vector<16x1xf32>
    %99 = arith.mulf %96, %96 : vector<16x256xf32>
    %cst_47 = arith.constant dense<0.000000e+00> : vector<16xf32>
    %100 = vector.multi_reduction <add>, %99, %cst_47 [1] : vector<16x256xf32> to vector<16xf32>
    %101 = vector.shape_cast %100 : vector<16xf32> to vector<16x1xf32>
    %102 = vector.extract_strided_slice %98 {offsets = [0, 0], sizes = [2, 1], strides = [1, 1]} : vector<16x1xf32> to vector<2x1xf32>
    %cst_48 = arith.constant dense<0.000000e+00> : vector<1xf32>
    %103 = vector.multi_reduction <add>, %102, %cst_48 [0] : vector<2x1xf32> to vector<1xf32>
    %104 = vector.shape_cast %103 : vector<1xf32> to vector<1x1xf32>
    %105 = vector.extract_strided_slice %101 {offsets = [0, 0], sizes = [2, 1], strides = [1, 1]} : vector<16x1xf32> to vector<2x1xf32>
    %cst_49 = arith.constant dense<0.000000e+00> : vector<1xf32>
    %106 = vector.multi_reduction <add>, %105, %cst_49 [0] : vector<2x1xf32> to vector<1xf32>
    %107 = vector.shape_cast %106 : vector<1xf32> to vector<1x1xf32>
    %cst_50 = arith.constant 0.001953125 : f32
    %108 = vector.broadcast %cst_50 : f32 to vector<1x1xf32>
    %109 = arith.mulf %104, %108 : vector<1x1xf32>
    %cst_51 = arith.constant 0.001953125 : f32
    %110 = vector.broadcast %cst_51 : f32 to vector<1x1xf32>
    %111 = arith.mulf %107, %110 : vector<1x1xf32>
    %112 = arith.mulf %109, %109 : vector<1x1xf32>
    %113 = arith.subf %111, %112 : vector<1x1xf32>
    %cst_52 = arith.constant 9.99999974E-6 : f32
    %114 = vector.broadcast %cst_52 : f32 to vector<1x1xf32>
    %115 = arith.addf %113, %114 : vector<1x1xf32>
    %116 = math.rsqrt %115 : vector<1x1xf32>
    %117 = vector.extract_strided_slice %94 {offsets = [0, 0], sizes = [2, 1], strides = [1, 1]} : vector<16x1xf32> to vector<2x1xf32>
    %118 = vector.broadcast %116 : vector<1x1xf32> to vector<2x1xf32>
    %119 = arith.mulf %117, %118 : vector<2x1xf32>
    %120 = vector.extract_strided_slice %95 {offsets = [0, 0], sizes = [2, 1], strides = [1, 1]} : vector<16x1xf32> to vector<2x1xf32>
    %121 = vector.broadcast %109 : vector<1x1xf32> to vector<2x1xf32>
    %122 = arith.mulf %121, %119 : vector<2x1xf32>
    %123 = arith.subf %120, %122 : vector<2x1xf32>
    %124 = vector.extract_strided_slice %98 {offsets = [2, 0], sizes = [2, 1], strides = [1, 1]} : vector<16x1xf32> to vector<2x1xf32>
    %cst_53 = arith.constant dense<0.000000e+00> : vector<1xf32>
    %125 = vector.multi_reduction <add>, %124, %cst_53 [0] : vector<2x1xf32> to vector<1xf32>
    %126 = vector.shape_cast %125 : vector<1xf32> to vector<1x1xf32>
    %127 = vector.extract_strided_slice %101 {offsets = [2, 0], sizes = [2, 1], strides = [1, 1]} : vector<16x1xf32> to vector<2x1xf32>
    %cst_54 = arith.constant dense<0.000000e+00> : vector<1xf32>
    %128 = vector.multi_reduction <add>, %127, %cst_54 [0] : vector<2x1xf32> to vector<1xf32>
    %129 = vector.shape_cast %128 : vector<1xf32> to vector<1x1xf32>
    %cst_55 = arith.constant 0.001953125 : f32
    %130 = vector.broadcast %cst_55 : f32 to vector<1x1xf32>
    %131 = arith.mulf %126, %130 : vector<1x1xf32>
    %cst_56 = arith.constant 0.001953125 : f32
    %132 = vector.broadcast %cst_56 : f32 to vector<1x1xf32>
    %133 = arith.mulf %129, %132 : vector<1x1xf32>
    %134 = arith.mulf %131, %131 : vector<1x1xf32>
    %135 = arith.subf %133, %134 : vector<1x1xf32>
    %cst_57 = arith.constant 9.99999974E-6 : f32
    %136 = vector.broadcast %cst_57 : f32 to vector<1x1xf32>
    %137 = arith.addf %135, %136 : vector<1x1xf32>
    %138 = math.rsqrt %137 : vector<1x1xf32>
    %139 = vector.extract_strided_slice %94 {offsets = [2, 0], sizes = [2, 1], strides = [1, 1]} : vector<16x1xf32> to vector<2x1xf32>
    %140 = vector.broadcast %138 : vector<1x1xf32> to vector<2x1xf32>
    %141 = arith.mulf %139, %140 : vector<2x1xf32>
    %142 = vector.extract_strided_slice %95 {offsets = [2, 0], sizes = [2, 1], strides = [1, 1]} : vector<16x1xf32> to vector<2x1xf32>
    %143 = vector.broadcast %131 : vector<1x1xf32> to vector<2x1xf32>
    %144 = arith.mulf %143, %141 : vector<2x1xf32>
    %145 = arith.subf %142, %144 : vector<2x1xf32>
    %146 = vector.extract_strided_slice %98 {offsets = [4, 0], sizes = [2, 1], strides = [1, 1]} : vector<16x1xf32> to vector<2x1xf32>
    %cst_58 = arith.constant dense<0.000000e+00> : vector<1xf32>
    %147 = vector.multi_reduction <add>, %146, %cst_58 [0] : vector<2x1xf32> to vector<1xf32>
    %148 = vector.shape_cast %147 : vector<1xf32> to vector<1x1xf32>
    %149 = vector.extract_strided_slice %101 {offsets = [4, 0], sizes = [2, 1], strides = [1, 1]} : vector<16x1xf32> to vector<2x1xf32>
    %cst_59 = arith.constant dense<0.000000e+00> : vector<1xf32>
    %150 = vector.multi_reduction <add>, %149, %cst_59 [0] : vector<2x1xf32> to vector<1xf32>
    %151 = vector.shape_cast %150 : vector<1xf32> to vector<1x1xf32>
    %cst_60 = arith.constant 0.001953125 : f32
    %152 = vector.broadcast %cst_60 : f32 to vector<1x1xf32>
    %153 = arith.mulf %148, %152 : vector<1x1xf32>
    %cst_61 = arith.constant 0.001953125 : f32
    %154 = vector.broadcast %cst_61 : f32 to vector<1x1xf32>
    %155 = arith.mulf %151, %154 : vector<1x1xf32>
    %156 = arith.mulf %153, %153 : vector<1x1xf32>
    %157 = arith.subf %155, %156 : vector<1x1xf32>
    %cst_62 = arith.constant 9.99999974E-6 : f32
    %158 = vector.broadcast %cst_62 : f32 to vector<1x1xf32>
    %159 = arith.addf %157, %158 : vector<1x1xf32>
    %160 = math.rsqrt %159 : vector<1x1xf32>
    %161 = vector.extract_strided_slice %94 {offsets = [4, 0], sizes = [2, 1], strides = [1, 1]} : vector<16x1xf32> to vector<2x1xf32>
    %162 = vector.broadcast %160 : vector<1x1xf32> to vector<2x1xf32>
    %163 = arith.mulf %161, %162 : vector<2x1xf32>
    %164 = vector.extract_strided_slice %95 {offsets = [4, 0], sizes = [2, 1], strides = [1, 1]} : vector<16x1xf32> to vector<2x1xf32>
    %165 = vector.broadcast %153 : vector<1x1xf32> to vector<2x1xf32>
    %166 = arith.mulf %165, %163 : vector<2x1xf32>
    %167 = arith.subf %164, %166 : vector<2x1xf32>
    %168 = vector.extract_strided_slice %98 {offsets = [6, 0], sizes = [2, 1], strides = [1, 1]} : vector<16x1xf32> to vector<2x1xf32>
    %cst_63 = arith.constant dense<0.000000e+00> : vector<1xf32>
    %169 = vector.multi_reduction <add>, %168, %cst_63 [0] : vector<2x1xf32> to vector<1xf32>
    %170 = vector.shape_cast %169 : vector<1xf32> to vector<1x1xf32>
    %171 = vector.extract_strided_slice %101 {offsets = [6, 0], sizes = [2, 1], strides = [1, 1]} : vector<16x1xf32> to vector<2x1xf32>
    %cst_64 = arith.constant dense<0.000000e+00> : vector<1xf32>
    %172 = vector.multi_reduction <add>, %171, %cst_64 [0] : vector<2x1xf32> to vector<1xf32>
    %173 = vector.shape_cast %172 : vector<1xf32> to vector<1x1xf32>
    %cst_65 = arith.constant 0.001953125 : f32
    %174 = vector.broadcast %cst_65 : f32 to vector<1x1xf32>
    %175 = arith.mulf %170, %174 : vector<1x1xf32>
    %cst_66 = arith.constant 0.001953125 : f32
    %176 = vector.broadcast %cst_66 : f32 to vector<1x1xf32>
    %177 = arith.mulf %173, %176 : vector<1x1xf32>
    %178 = arith.mulf %175, %175 : vector<1x1xf32>
    %179 = arith.subf %177, %178 : vector<1x1xf32>
    %cst_67 = arith.constant 9.99999974E-6 : f32
    %180 = vector.broadcast %cst_67 : f32 to vector<1x1xf32>
    %181 = arith.addf %179, %180 : vector<1x1xf32>
    %182 = math.rsqrt %181 : vector<1x1xf32>
    %183 = vector.extract_strided_slice %94 {offsets = [6, 0], sizes = [2, 1], strides = [1, 1]} : vector<16x1xf32> to vector<2x1xf32>
    %184 = vector.broadcast %182 : vector<1x1xf32> to vector<2x1xf32>
    %185 = arith.mulf %183, %184 : vector<2x1xf32>
    %186 = vector.extract_strided_slice %95 {offsets = [6, 0], sizes = [2, 1], strides = [1, 1]} : vector<16x1xf32> to vector<2x1xf32>
    %187 = vector.broadcast %175 : vector<1x1xf32> to vector<2x1xf32>
    %188 = arith.mulf %187, %185 : vector<2x1xf32>
    %189 = arith.subf %186, %188 : vector<2x1xf32>
    %190 = vector.extract_strided_slice %98 {offsets = [8, 0], sizes = [2, 1], strides = [1, 1]} : vector<16x1xf32> to vector<2x1xf32>
    %cst_68 = arith.constant dense<0.000000e+00> : vector<1xf32>
    %191 = vector.multi_reduction <add>, %190, %cst_68 [0] : vector<2x1xf32> to vector<1xf32>
    %192 = vector.shape_cast %191 : vector<1xf32> to vector<1x1xf32>
    %193 = vector.extract_strided_slice %101 {offsets = [8, 0], sizes = [2, 1], strides = [1, 1]} : vector<16x1xf32> to vector<2x1xf32>
    %cst_69 = arith.constant dense<0.000000e+00> : vector<1xf32>
    %194 = vector.multi_reduction <add>, %193, %cst_69 [0] : vector<2x1xf32> to vector<1xf32>
    %195 = vector.shape_cast %194 : vector<1xf32> to vector<1x1xf32>
    %cst_70 = arith.constant 0.001953125 : f32
    %196 = vector.broadcast %cst_70 : f32 to vector<1x1xf32>
    %197 = arith.mulf %192, %196 : vector<1x1xf32>
    %cst_71 = arith.constant 0.001953125 : f32
    %198 = vector.broadcast %cst_71 : f32 to vector<1x1xf32>
    %199 = arith.mulf %195, %198 : vector<1x1xf32>
    %200 = arith.mulf %197, %197 : vector<1x1xf32>
    %201 = arith.subf %199, %200 : vector<1x1xf32>
    %cst_72 = arith.constant 9.99999974E-6 : f32
    %202 = vector.broadcast %cst_72 : f32 to vector<1x1xf32>
    %203 = arith.addf %201, %202 : vector<1x1xf32>
    %204 = math.rsqrt %203 : vector<1x1xf32>
    %205 = vector.extract_strided_slice %94 {offsets = [8, 0], sizes = [2, 1], strides = [1, 1]} : vector<16x1xf32> to vector<2x1xf32>
    %206 = vector.broadcast %204 : vector<1x1xf32> to vector<2x1xf32>
    %207 = arith.mulf %205, %206 : vector<2x1xf32>
    %208 = vector.extract_strided_slice %95 {offsets = [8, 0], sizes = [2, 1], strides = [1, 1]} : vector<16x1xf32> to vector<2x1xf32>
    %209 = vector.broadcast %197 : vector<1x1xf32> to vector<2x1xf32>
    %210 = arith.mulf %209, %207 : vector<2x1xf32>
    %211 = arith.subf %208, %210 : vector<2x1xf32>
    %212 = vector.extract_strided_slice %98 {offsets = [10, 0], sizes = [2, 1], strides = [1, 1]} : vector<16x1xf32> to vector<2x1xf32>
    %cst_73 = arith.constant dense<0.000000e+00> : vector<1xf32>
    %213 = vector.multi_reduction <add>, %212, %cst_73 [0] : vector<2x1xf32> to vector<1xf32>
    %214 = vector.shape_cast %213 : vector<1xf32> to vector<1x1xf32>
    %215 = vector.extract_strided_slice %101 {offsets = [10, 0], sizes = [2, 1], strides = [1, 1]} : vector<16x1xf32> to vector<2x1xf32>
    %cst_74 = arith.constant dense<0.000000e+00> : vector<1xf32>
    %216 = vector.multi_reduction <add>, %215, %cst_74 [0] : vector<2x1xf32> to vector<1xf32>
    %217 = vector.shape_cast %216 : vector<1xf32> to vector<1x1xf32>
    %cst_75 = arith.constant 0.001953125 : f32
    %218 = vector.broadcast %cst_75 : f32 to vector<1x1xf32>
    %219 = arith.mulf %214, %218 : vector<1x1xf32>
    %cst_76 = arith.constant 0.001953125 : f32
    %220 = vector.broadcast %cst_76 : f32 to vector<1x1xf32>
    %221 = arith.mulf %217, %220 : vector<1x1xf32>
    %222 = arith.mulf %219, %219 : vector<1x1xf32>
    %223 = arith.subf %221, %222 : vector<1x1xf32>
    %cst_77 = arith.constant 9.99999974E-6 : f32
    %224 = vector.broadcast %cst_77 : f32 to vector<1x1xf32>
    %225 = arith.addf %223, %224 : vector<1x1xf32>
    %226 = math.rsqrt %225 : vector<1x1xf32>
    %227 = vector.extract_strided_slice %94 {offsets = [10, 0], sizes = [2, 1], strides = [1, 1]} : vector<16x1xf32> to vector<2x1xf32>
    %228 = vector.broadcast %226 : vector<1x1xf32> to vector<2x1xf32>
    %229 = arith.mulf %227, %228 : vector<2x1xf32>
    %230 = vector.extract_strided_slice %95 {offsets = [10, 0], sizes = [2, 1], strides = [1, 1]} : vector<16x1xf32> to vector<2x1xf32>
    %231 = vector.broadcast %219 : vector<1x1xf32> to vector<2x1xf32>
    %232 = arith.mulf %231, %229 : vector<2x1xf32>
    %233 = arith.subf %230, %232 : vector<2x1xf32>
    %234 = vector.extract_strided_slice %98 {offsets = [12, 0], sizes = [2, 1], strides = [1, 1]} : vector<16x1xf32> to vector<2x1xf32>
    %cst_78 = arith.constant dense<0.000000e+00> : vector<1xf32>
    %235 = vector.multi_reduction <add>, %234, %cst_78 [0] : vector<2x1xf32> to vector<1xf32>
    %236 = vector.shape_cast %235 : vector<1xf32> to vector<1x1xf32>
    %237 = vector.extract_strided_slice %101 {offsets = [12, 0], sizes = [2, 1], strides = [1, 1]} : vector<16x1xf32> to vector<2x1xf32>
    %cst_79 = arith.constant dense<0.000000e+00> : vector<1xf32>
    %238 = vector.multi_reduction <add>, %237, %cst_79 [0] : vector<2x1xf32> to vector<1xf32>
    %239 = vector.shape_cast %238 : vector<1xf32> to vector<1x1xf32>
    %cst_80 = arith.constant 0.001953125 : f32
    %240 = vector.broadcast %cst_80 : f32 to vector<1x1xf32>
    %241 = arith.mulf %236, %240 : vector<1x1xf32>
    %cst_81 = arith.constant 0.001953125 : f32
    %242 = vector.broadcast %cst_81 : f32 to vector<1x1xf32>
    %243 = arith.mulf %239, %242 : vector<1x1xf32>
    %244 = arith.mulf %241, %241 : vector<1x1xf32>
    %245 = arith.subf %243, %244 : vector<1x1xf32>
    %cst_82 = arith.constant 9.99999974E-6 : f32
    %246 = vector.broadcast %cst_82 : f32 to vector<1x1xf32>
    %247 = arith.addf %245, %246 : vector<1x1xf32>
    %248 = math.rsqrt %247 : vector<1x1xf32>
    %249 = vector.extract_strided_slice %94 {offsets = [12, 0], sizes = [2, 1], strides = [1, 1]} : vector<16x1xf32> to vector<2x1xf32>
    %250 = vector.broadcast %248 : vector<1x1xf32> to vector<2x1xf32>
    %251 = arith.mulf %249, %250 : vector<2x1xf32>
    %252 = vector.extract_strided_slice %95 {offsets = [12, 0], sizes = [2, 1], strides = [1, 1]} : vector<16x1xf32> to vector<2x1xf32>
    %253 = vector.broadcast %241 : vector<1x1xf32> to vector<2x1xf32>
    %254 = arith.mulf %253, %251 : vector<2x1xf32>
    %255 = arith.subf %252, %254 : vector<2x1xf32>
    %256 = vector.extract_strided_slice %98 {offsets = [14, 0], sizes = [2, 1], strides = [1, 1]} : vector<16x1xf32> to vector<2x1xf32>
    %cst_83 = arith.constant dense<0.000000e+00> : vector<1xf32>
    %257 = vector.multi_reduction <add>, %256, %cst_83 [0] : vector<2x1xf32> to vector<1xf32>
    %258 = vector.shape_cast %257 : vector<1xf32> to vector<1x1xf32>
    %259 = vector.extract_strided_slice %101 {offsets = [14, 0], sizes = [2, 1], strides = [1, 1]} : vector<16x1xf32> to vector<2x1xf32>
    %cst_84 = arith.constant dense<0.000000e+00> : vector<1xf32>
    %260 = vector.multi_reduction <add>, %259, %cst_84 [0] : vector<2x1xf32> to vector<1xf32>
    %261 = vector.shape_cast %260 : vector<1xf32> to vector<1x1xf32>
    %cst_85 = arith.constant 0.001953125 : f32
    %262 = vector.broadcast %cst_85 : f32 to vector<1x1xf32>
    %263 = arith.mulf %258, %262 : vector<1x1xf32>
    %cst_86 = arith.constant 0.001953125 : f32
    %264 = vector.broadcast %cst_86 : f32 to vector<1x1xf32>
    %265 = arith.mulf %261, %264 : vector<1x1xf32>
    %266 = arith.mulf %263, %263 : vector<1x1xf32>
    %267 = arith.subf %265, %266 : vector<1x1xf32>
    %cst_87 = arith.constant 9.99999974E-6 : f32
    %268 = vector.broadcast %cst_87 : f32 to vector<1x1xf32>
    %269 = arith.addf %267, %268 : vector<1x1xf32>
    %270 = math.rsqrt %269 : vector<1x1xf32>
    %271 = vector.extract_strided_slice %94 {offsets = [14, 0], sizes = [2, 1], strides = [1, 1]} : vector<16x1xf32> to vector<2x1xf32>
    %272 = vector.broadcast %270 : vector<1x1xf32> to vector<2x1xf32>
    %273 = arith.mulf %271, %272 : vector<2x1xf32>
    %274 = vector.extract_strided_slice %95 {offsets = [14, 0], sizes = [2, 1], strides = [1, 1]} : vector<16x1xf32> to vector<2x1xf32>
    %275 = vector.broadcast %263 : vector<1x1xf32> to vector<2x1xf32>
    %276 = arith.mulf %275, %273 : vector<2x1xf32>
    %277 = arith.subf %274, %276 : vector<2x1xf32>
    %278 = tpu.concatenate %119, %141, %163, %185, %207, %229, %251, %273 in 0 : vector<2x1xf32>, vector<2x1xf32>, vector<2x1xf32>, vector<2x1xf32>, vector<2x1xf32>, vector<2x1xf32>, vector<2x1xf32>, vector<2x1xf32> -> vector<16x1xf32>
    %279 = tpu.concatenate %123, %145, %167, %189, %211, %233, %255, %277 in 0 : vector<2x1xf32>, vector<2x1xf32>, vector<2x1xf32>, vector<2x1xf32>, vector<2x1xf32>, vector<2x1xf32>, vector<2x1xf32>, vector<2x1xf32> -> vector<16x1xf32>
    %280 = vector.broadcast %278 : vector<16x1xf32> to vector<16x256xf32>
    %281 = arith.mulf %96, %280 : vector<16x256xf32>
    %282 = vector.broadcast %279 : vector<16x1xf32> to vector<16x256xf32>
    %283 = arith.addf %281, %282 : vector<16x256xf32>
    %cst_88 = arith.constant 0.000000e+00 : f32
    %284 = vector.broadcast %cst_88 : f32 to vector<16x256xf32>
    %285 = arith.cmpf ogt, %283, %284 : vector<16x256xf32>
    %286 = math.exp %283 : vector<16x256xf32>
    %cst_89 = arith.constant 1.000000e+00 : f32
    %287 = vector.broadcast %cst_89 : f32 to vector<16x256xf32>
    %288 = arith.subf %286, %287 : vector<16x256xf32>
    %289 = arith.select %285, %283, %288 : vector<16x256xi1>, vector<16x256xf32>
    %c0_90 = arith.constant 0 : index
    %c0_91 = arith.constant 0 : index
    %c0_92 = arith.constant 0 : index
    %290 = vector.load %arg7[%c0_90, %c0_91, %c0_92] : memref<2x16x256xf32, #tpu.memory_space<vmem>>, vector<1x16x256xf32>
    %291 = vector.shape_cast %290 : vector<1x16x256xf32> to vector<16x256xf32>
    %292 = vector.shape_cast %289 : vector<16x256xf32> to vector<1x16x256xf32>
    tpu.vector_store %arg7[%c0_90, %c0_91, %c0_92], %292 {strides = array<i32>} : memref<2x16x256xf32, #tpu.memory_space<vmem>>, vector<1x16x256xf32>,
    %293 = vector.extract_strided_slice %93 {offsets = [0, 256], sizes = [16, 256], strides = [1, 1]} : vector<16x512xf32> to vector<16x256xf32>
    %cst_93 = arith.constant dense<0.000000e+00> : vector<16xf32>
    %294 = vector.multi_reduction <add>, %293, %cst_93 [1] : vector<16x256xf32> to vector<16xf32>
    %295 = vector.shape_cast %294 : vector<16xf32> to vector<16x1xf32>
    %296 = arith.mulf %293, %293 : vector<16x256xf32>
    %cst_94 = arith.constant dense<0.000000e+00> : vector<16xf32>
    %297 = vector.multi_reduction <add>, %296, %cst_94 [1] : vector<16x256xf32> to vector<16xf32>
    %298 = vector.shape_cast %297 : vector<16xf32> to vector<16x1xf32>
    %299 = vector.extract_strided_slice %295 {offsets = [0, 0], sizes = [2, 1], strides = [1, 1]} : vector<16x1xf32> to vector<2x1xf32>
    %cst_95 = arith.constant dense<0.000000e+00> : vector<1xf32>
    %300 = vector.multi_reduction <add>, %299, %cst_95 [0] : vector<2x1xf32> to vector<1xf32>
    %301 = vector.shape_cast %300 : vector<1xf32> to vector<1x1xf32>
    %302 = vector.extract_strided_slice %298 {offsets = [0, 0], sizes = [2, 1], strides = [1, 1]} : vector<16x1xf32> to vector<2x1xf32>
    %cst_96 = arith.constant dense<0.000000e+00> : vector<1xf32>
    %303 = vector.multi_reduction <add>, %302, %cst_96 [0] : vector<2x1xf32> to vector<1xf32>
    %304 = vector.shape_cast %303 : vector<1xf32> to vector<1x1xf32>
    %cst_97 = arith.constant 0.001953125 : f32
    %305 = vector.broadcast %cst_97 : f32 to vector<1x1xf32>
    %306 = arith.mulf %301, %305 : vector<1x1xf32>
    %cst_98 = arith.constant 0.001953125 : f32
    %307 = vector.broadcast %cst_98 : f32 to vector<1x1xf32>
    %308 = arith.mulf %304, %307 : vector<1x1xf32>
    %309 = arith.mulf %306, %306 : vector<1x1xf32>
    %310 = arith.subf %308, %309 : vector<1x1xf32>
    %cst_99 = arith.constant 9.99999974E-6 : f32
    %311 = vector.broadcast %cst_99 : f32 to vector<1x1xf32>
    %312 = arith.addf %310, %311 : vector<1x1xf32>
    %313 = math.rsqrt %312 : vector<1x1xf32>
    %314 = vector.extract_strided_slice %94 {offsets = [0, 0], sizes = [2, 1], strides = [1, 1]} : vector<16x1xf32> to vector<2x1xf32>
    %315 = vector.broadcast %313 : vector<1x1xf32> to vector<2x1xf32>
    %316 = arith.mulf %314, %315 : vector<2x1xf32>
    %317 = vector.extract_strided_slice %95 {offsets = [0, 0], sizes = [2, 1], strides = [1, 1]} : vector<16x1xf32> to vector<2x1xf32>
    %318 = vector.broadcast %306 : vector<1x1xf32> to vector<2x1xf32>
    %319 = arith.mulf %318, %316 : vector<2x1xf32>
    %320 = arith.subf %317, %319 : vector<2x1xf32>
    %321 = vector.extract_strided_slice %295 {offsets = [2, 0], sizes = [2, 1], strides = [1, 1]} : vector<16x1xf32> to vector<2x1xf32>
    %cst_100 = arith.constant dense<0.000000e+00> : vector<1xf32>
    %322 = vector.multi_reduction <add>, %321, %cst_100 [0] : vector<2x1xf32> to vector<1xf32>
    %323 = vector.shape_cast %322 : vector<1xf32> to vector<1x1xf32>
    %324 = vector.extract_strided_slice %298 {offsets = [2, 0], sizes = [2, 1], strides = [1, 1]} : vector<16x1xf32> to vector<2x1xf32>
    %cst_101 = arith.constant dense<0.000000e+00> : vector<1xf32>
    %325 = vector.multi_reduction <add>, %324, %cst_101 [0] : vector<2x1xf32> to vector<1xf32>
    %326 = vector.shape_cast %325 : vector<1xf32> to vector<1x1xf32>
    %cst_102 = arith.constant 0.001953125 : f32
    %327 = vector.broadcast %cst_102 : f32 to vector<1x1xf32>
    %328 = arith.mulf %323, %327 : vector<1x1xf32>
    %cst_103 = arith.constant 0.001953125 : f32
    %329 = vector.broadcast %cst_103 : f32 to vector<1x1xf32>
    %330 = arith.mulf %326, %329 : vector<1x1xf32>
    %331 = arith.mulf %328, %328 : vector<1x1xf32>
    %332 = arith.subf %330, %331 : vector<1x1xf32>
    %cst_104 = arith.constant 9.99999974E-6 : f32
    %333 = vector.broadcast %cst_104 : f32 to vector<1x1xf32>
    %334 = arith.addf %332, %333 : vector<1x1xf32>
    %335 = math.rsqrt %334 : vector<1x1xf32>
    %336 = vector.extract_strided_slice %94 {offsets = [2, 0], sizes = [2, 1], strides = [1, 1]} : vector<16x1xf32> to vector<2x1xf32>
    %337 = vector.broadcast %335 : vector<1x1xf32> to vector<2x1xf32>
    %338 = arith.mulf %336, %337 : vector<2x1xf32>
    %339 = vector.extract_strided_slice %95 {offsets = [2, 0], sizes = [2, 1], strides = [1, 1]} : vector<16x1xf32> to vector<2x1xf32>
    %340 = vector.broadcast %328 : vector<1x1xf32> to vector<2x1xf32>
    %341 = arith.mulf %340, %338 : vector<2x1xf32>
    %342 = arith.subf %339, %341 : vector<2x1xf32>
    %343 = vector.extract_strided_slice %295 {offsets = [4, 0], sizes = [2, 1], strides = [1, 1]} : vector<16x1xf32> to vector<2x1xf32>
    %cst_105 = arith.constant dense<0.000000e+00> : vector<1xf32>
    %344 = vector.multi_reduction <add>, %343, %cst_105 [0] : vector<2x1xf32> to vector<1xf32>
    %345 = vector.shape_cast %344 : vector<1xf32> to vector<1x1xf32>
    %346 = vector.extract_strided_slice %298 {offsets = [4, 0], sizes = [2, 1], strides = [1, 1]} : vector<16x1xf32> to vector<2x1xf32>
    %cst_106 = arith.constant dense<0.000000e+00> : vector<1xf32>
    %347 = vector.multi_reduction <add>, %346, %cst_106 [0] : vector<2x1xf32> to vector<1xf32>
    %348 = vector.shape_cast %347 : vector<1xf32> to vector<1x1xf32>
    %cst_107 = arith.constant 0.001953125 : f32
    %349 = vector.broadcast %cst_107 : f32 to vector<1x1xf32>
    %350 = arith.mulf %345, %349 : vector<1x1xf32>
    %cst_108 = arith.constant 0.001953125 : f32
    %351 = vector.broadcast %cst_108 : f32 to vector<1x1xf32>
    %352 = arith.mulf %348, %351 : vector<1x1xf32>
    %353 = arith.mulf %350, %350 : vector<1x1xf32>
    %354 = arith.subf %352, %353 : vector<1x1xf32>
    %cst_109 = arith.constant 9.99999974E-6 : f32
    %355 = vector.broadcast %cst_109 : f32 to vector<1x1xf32>
    %356 = arith.addf %354, %355 : vector<1x1xf32>
    %357 = math.rsqrt %356 : vector<1x1xf32>
    %358 = vector.extract_strided_slice %94 {offsets = [4, 0], sizes = [2, 1], strides = [1, 1]} : vector<16x1xf32> to vector<2x1xf32>
    %359 = vector.broadcast %357 : vector<1x1xf32> to vector<2x1xf32>
    %360 = arith.mulf %358, %359 : vector<2x1xf32>
    %361 = vector.extract_strided_slice %95 {offsets = [4, 0], sizes = [2, 1], strides = [1, 1]} : vector<16x1xf32> to vector<2x1xf32>
    %362 = vector.broadcast %350 : vector<1x1xf32> to vector<2x1xf32>
    %363 = arith.mulf %362, %360 : vector<2x1xf32>
    %364 = arith.subf %361, %363 : vector<2x1xf32>
    %365 = vector.extract_strided_slice %295 {offsets = [6, 0], sizes = [2, 1], strides = [1, 1]} : vector<16x1xf32> to vector<2x1xf32>
    %cst_110 = arith.constant dense<0.000000e+00> : vector<1xf32>
    %366 = vector.multi_reduction <add>, %365, %cst_110 [0] : vector<2x1xf32> to vector<1xf32>
    %367 = vector.shape_cast %366 : vector<1xf32> to vector<1x1xf32>
    %368 = vector.extract_strided_slice %298 {offsets = [6, 0], sizes = [2, 1], strides = [1, 1]} : vector<16x1xf32> to vector<2x1xf32>
    %cst_111 = arith.constant dense<0.000000e+00> : vector<1xf32>
    %369 = vector.multi_reduction <add>, %368, %cst_111 [0] : vector<2x1xf32> to vector<1xf32>
    %370 = vector.shape_cast %369 : vector<1xf32> to vector<1x1xf32>
    %cst_112 = arith.constant 0.001953125 : f32
    %371 = vector.broadcast %cst_112 : f32 to vector<1x1xf32>
    %372 = arith.mulf %367, %371 : vector<1x1xf32>
    %cst_113 = arith.constant 0.001953125 : f32
    %373 = vector.broadcast %cst_113 : f32 to vector<1x1xf32>
    %374 = arith.mulf %370, %373 : vector<1x1xf32>
    %375 = arith.mulf %372, %372 : vector<1x1xf32>
    %376 = arith.subf %374, %375 : vector<1x1xf32>
    %cst_114 = arith.constant 9.99999974E-6 : f32
    %377 = vector.broadcast %cst_114 : f32 to vector<1x1xf32>
    %378 = arith.addf %376, %377 : vector<1x1xf32>
    %379 = math.rsqrt %378 : vector<1x1xf32>
    %380 = vector.extract_strided_slice %94 {offsets = [6, 0], sizes = [2, 1], strides = [1, 1]} : vector<16x1xf32> to vector<2x1xf32>
    %381 = vector.broadcast %379 : vector<1x1xf32> to vector<2x1xf32>
    %382 = arith.mulf %380, %381 : vector<2x1xf32>
    %383 = vector.extract_strided_slice %95 {offsets = [6, 0], sizes = [2, 1], strides = [1, 1]} : vector<16x1xf32> to vector<2x1xf32>
    %384 = vector.broadcast %372 : vector<1x1xf32> to vector<2x1xf32>
    %385 = arith.mulf %384, %382 : vector<2x1xf32>
    %386 = arith.subf %383, %385 : vector<2x1xf32>
    %387 = vector.extract_strided_slice %295 {offsets = [8, 0], sizes = [2, 1], strides = [1, 1]} : vector<16x1xf32> to vector<2x1xf32>
    %cst_115 = arith.constant dense<0.000000e+00> : vector<1xf32>
    %388 = vector.multi_reduction <add>, %387, %cst_115 [0] : vector<2x1xf32> to vector<1xf32>
    %389 = vector.shape_cast %388 : vector<1xf32> to vector<1x1xf32>
    %390 = vector.extract_strided_slice %298 {offsets = [8, 0], sizes = [2, 1], strides = [1, 1]} : vector<16x1xf32> to vector<2x1xf32>
    %cst_116 = arith.constant dense<0.000000e+00> : vector<1xf32>
    %391 = vector.multi_reduction <add>, %390, %cst_116 [0] : vector<2x1xf32> to vector<1xf32>
    %392 = vector.shape_cast %391 : vector<1xf32> to vector<1x1xf32>
    %cst_117 = arith.constant 0.001953125 : f32
    %393 = vector.broadcast %cst_117 : f32 to vector<1x1xf32>
    %394 = arith.mulf %389, %393 : vector<1x1xf32>
    %cst_118 = arith.constant 0.001953125 : f32
    %395 = vector.broadcast %cst_118 : f32 to vector<1x1xf32>
    %396 = arith.mulf %392, %395 : vector<1x1xf32>
    %397 = arith.mulf %394, %394 : vector<1x1xf32>
    %398 = arith.subf %396, %397 : vector<1x1xf32>
    %cst_119 = arith.constant 9.99999974E-6 : f32
    %399 = vector.broadcast %cst_119 : f32 to vector<1x1xf32>
    %400 = arith.addf %398, %399 : vector<1x1xf32>
    %401 = math.rsqrt %400 : vector<1x1xf32>
    %402 = vector.extract_strided_slice %94 {offsets = [8, 0], sizes = [2, 1], strides = [1, 1]} : vector<16x1xf32> to vector<2x1xf32>
    %403 = vector.broadcast %401 : vector<1x1xf32> to vector<2x1xf32>
    %404 = arith.mulf %402, %403 : vector<2x1xf32>
    %405 = vector.extract_strided_slice %95 {offsets = [8, 0], sizes = [2, 1], strides = [1, 1]} : vector<16x1xf32> to vector<2x1xf32>
    %406 = vector.broadcast %394 : vector<1x1xf32> to vector<2x1xf32>
    %407 = arith.mulf %406, %404 : vector<2x1xf32>
    %408 = arith.subf %405, %407 : vector<2x1xf32>
    %409 = vector.extract_strided_slice %295 {offsets = [10, 0], sizes = [2, 1], strides = [1, 1]} : vector<16x1xf32> to vector<2x1xf32>
    %cst_120 = arith.constant dense<0.000000e+00> : vector<1xf32>
    %410 = vector.multi_reduction <add>, %409, %cst_120 [0] : vector<2x1xf32> to vector<1xf32>
    %411 = vector.shape_cast %410 : vector<1xf32> to vector<1x1xf32>
    %412 = vector.extract_strided_slice %298 {offsets = [10, 0], sizes = [2, 1], strides = [1, 1]} : vector<16x1xf32> to vector<2x1xf32>
    %cst_121 = arith.constant dense<0.000000e+00> : vector<1xf32>
    %413 = vector.multi_reduction <add>, %412, %cst_121 [0] : vector<2x1xf32> to vector<1xf32>
    %414 = vector.shape_cast %413 : vector<1xf32> to vector<1x1xf32>
    %cst_122 = arith.constant 0.001953125 : f32
    %415 = vector.broadcast %cst_122 : f32 to vector<1x1xf32>
    %416 = arith.mulf %411, %415 : vector<1x1xf32>
    %cst_123 = arith.constant 0.001953125 : f32
    %417 = vector.broadcast %cst_123 : f32 to vector<1x1xf32>
    %418 = arith.mulf %414, %417 : vector<1x1xf32>
    %419 = arith.mulf %416, %416 : vector<1x1xf32>
    %420 = arith.subf %418, %419 : vector<1x1xf32>
    %cst_124 = arith.constant 9.99999974E-6 : f32
    %421 = vector.broadcast %cst_124 : f32 to vector<1x1xf32>
    %422 = arith.addf %420, %421 : vector<1x1xf32>
    %423 = math.rsqrt %422 : vector<1x1xf32>
    %424 = vector.extract_strided_slice %94 {offsets = [10, 0], sizes = [2, 1], strides = [1, 1]} : vector<16x1xf32> to vector<2x1xf32>
    %425 = vector.broadcast %423 : vector<1x1xf32> to vector<2x1xf32>
    %426 = arith.mulf %424, %425 : vector<2x1xf32>
    %427 = vector.extract_strided_slice %95 {offsets = [10, 0], sizes = [2, 1], strides = [1, 1]} : vector<16x1xf32> to vector<2x1xf32>
    %428 = vector.broadcast %416 : vector<1x1xf32> to vector<2x1xf32>
    %429 = arith.mulf %428, %426 : vector<2x1xf32>
    %430 = arith.subf %427, %429 : vector<2x1xf32>
    %431 = vector.extract_strided_slice %295 {offsets = [12, 0], sizes = [2, 1], strides = [1, 1]} : vector<16x1xf32> to vector<2x1xf32>
    %cst_125 = arith.constant dense<0.000000e+00> : vector<1xf32>
    %432 = vector.multi_reduction <add>, %431, %cst_125 [0] : vector<2x1xf32> to vector<1xf32>
    %433 = vector.shape_cast %432 : vector<1xf32> to vector<1x1xf32>
    %434 = vector.extract_strided_slice %298 {offsets = [12, 0], sizes = [2, 1], strides = [1, 1]} : vector<16x1xf32> to vector<2x1xf32>
    %cst_126 = arith.constant dense<0.000000e+00> : vector<1xf32>
    %435 = vector.multi_reduction <add>, %434, %cst_126 [0] : vector<2x1xf32> to vector<1xf32>
    %436 = vector.shape_cast %435 : vector<1xf32> to vector<1x1xf32>
    %cst_127 = arith.constant 0.001953125 : f32
    %437 = vector.broadcast %cst_127 : f32 to vector<1x1xf32>
    %438 = arith.mulf %433, %437 : vector<1x1xf32>
    %cst_128 = arith.constant 0.001953125 : f32
    %439 = vector.broadcast %cst_128 : f32 to vector<1x1xf32>
    %440 = arith.mulf %436, %439 : vector<1x1xf32>
    %441 = arith.mulf %438, %438 : vector<1x1xf32>
    %442 = arith.subf %440, %441 : vector<1x1xf32>
    %cst_129 = arith.constant 9.99999974E-6 : f32
    %443 = vector.broadcast %cst_129 : f32 to vector<1x1xf32>
    %444 = arith.addf %442, %443 : vector<1x1xf32>
    %445 = math.rsqrt %444 : vector<1x1xf32>
    %446 = vector.extract_strided_slice %94 {offsets = [12, 0], sizes = [2, 1], strides = [1, 1]} : vector<16x1xf32> to vector<2x1xf32>
    %447 = vector.broadcast %445 : vector<1x1xf32> to vector<2x1xf32>
    %448 = arith.mulf %446, %447 : vector<2x1xf32>
    %449 = vector.extract_strided_slice %95 {offsets = [12, 0], sizes = [2, 1], strides = [1, 1]} : vector<16x1xf32> to vector<2x1xf32>
    %450 = vector.broadcast %438 : vector<1x1xf32> to vector<2x1xf32>
    %451 = arith.mulf %450, %448 : vector<2x1xf32>
    %452 = arith.subf %449, %451 : vector<2x1xf32>
    %453 = vector.extract_strided_slice %295 {offsets = [14, 0], sizes = [2, 1], strides = [1, 1]} : vector<16x1xf32> to vector<2x1xf32>
    %cst_130 = arith.constant dense<0.000000e+00> : vector<1xf32>
    %454 = vector.multi_reduction <add>, %453, %cst_130 [0] : vector<2x1xf32> to vector<1xf32>
    %455 = vector.shape_cast %454 : vector<1xf32> to vector<1x1xf32>
    %456 = vector.extract_strided_slice %298 {offsets = [14, 0], sizes = [2, 1], strides = [1, 1]} : vector<16x1xf32> to vector<2x1xf32>
    %cst_131 = arith.constant dense<0.000000e+00> : vector<1xf32>
    %457 = vector.multi_reduction <add>, %456, %cst_131 [0] : vector<2x1xf32> to vector<1xf32>
    %458 = vector.shape_cast %457 : vector<1xf32> to vector<1x1xf32>
    %cst_132 = arith.constant 0.001953125 : f32
    %459 = vector.broadcast %cst_132 : f32 to vector<1x1xf32>
    %460 = arith.mulf %455, %459 : vector<1x1xf32>
    %cst_133 = arith.constant 0.001953125 : f32
    %461 = vector.broadcast %cst_133 : f32 to vector<1x1xf32>
    %462 = arith.mulf %458, %461 : vector<1x1xf32>
    %463 = arith.mulf %460, %460 : vector<1x1xf32>
    %464 = arith.subf %462, %463 : vector<1x1xf32>
    %cst_134 = arith.constant 9.99999974E-6 : f32
    %465 = vector.broadcast %cst_134 : f32 to vector<1x1xf32>
    %466 = arith.addf %464, %465 : vector<1x1xf32>
    %467 = math.rsqrt %466 : vector<1x1xf32>
    %468 = vector.extract_strided_slice %94 {offsets = [14, 0], sizes = [2, 1], strides = [1, 1]} : vector<16x1xf32> to vector<2x1xf32>
    %469 = vector.broadcast %467 : vector<1x1xf32> to vector<2x1xf32>
    %470 = arith.mulf %468, %469 : vector<2x1xf32>
    %471 = vector.extract_strided_slice %95 {offsets = [14, 0], sizes = [2, 1], strides = [1, 1]} : vector<16x1xf32> to vector<2x1xf32>
    %472 = vector.broadcast %460 : vector<1x1xf32> to vector<2x1xf32>
    %473 = arith.mulf %472, %470 : vector<2x1xf32>
    %474 = arith.subf %471, %473 : vector<2x1xf32>
    %475 = tpu.concatenate %316, %338, %360, %382, %404, %426, %448, %470 in 0 : vector<2x1xf32>, vector<2x1xf32>, vector<2x1xf32>, vector<2x1xf32>, vector<2x1xf32>, vector<2x1xf32>, vector<2x1xf32>, vector<2x1xf32> -> vector<16x1xf32>
    %476 = tpu.concatenate %320, %342, %364, %386, %408, %430, %452, %474 in 0 : vector<2x1xf32>, vector<2x1xf32>, vector<2x1xf32>, vector<2x1xf32>, vector<2x1xf32>, vector<2x1xf32>, vector<2x1xf32>, vector<2x1xf32> -> vector<16x1xf32>
    %477 = vector.broadcast %475 : vector<16x1xf32> to vector<16x256xf32>
    %478 = arith.mulf %293, %477 : vector<16x256xf32>
    %479 = vector.broadcast %476 : vector<16x1xf32> to vector<16x256xf32>
    %480 = arith.addf %478, %479 : vector<16x256xf32>
    %cst_135 = arith.constant 0.000000e+00 : f32
    %481 = vector.broadcast %cst_135 : f32 to vector<16x256xf32>
    %482 = arith.cmpf ogt, %480, %481 : vector<16x256xf32>
    %483 = math.exp %480 : vector<16x256xf32>
    %cst_136 = arith.constant 1.000000e+00 : f32
    %484 = vector.broadcast %cst_136 : f32 to vector<16x256xf32>
    %485 = arith.subf %483, %484 : vector<16x256xf32>
    %486 = arith.select %482, %480, %485 : vector<16x256xi1>, vector<16x256xf32>
    %c1_137 = arith.constant 1 : index
    %c0_138 = arith.constant 0 : index
    %c0_139 = arith.constant 0 : index
    %487 = vector.load %arg7[%c1_137, %c0_138, %c0_139] : memref<2x16x256xf32, #tpu.memory_space<vmem>>, vector<1x16x256xf32>
    %488 = vector.shape_cast %487 : vector<1x16x256xf32> to vector<16x256xf32>
    %489 = vector.shape_cast %486 : vector<16x256xf32> to vector<1x16x256xf32>
    tpu.vector_store %arg7[%c1_137, %c0_138, %c0_139], %489 {strides = array<i32>} : memref<2x16x256xf32, #tpu.memory_space<vmem>>, vector<1x16x256xf32>,
    return
  }
  func.func @transform_0(%arg0: i32) -> (i32, i32, i32) {
    %c0_i32 = arith.constant 0 : i32
    %c0_i32_0 = arith.constant 0 : i32
    %c0_i32_1 = arith.constant 0 : i32
    return %arg0, %c0_i32, %c0_i32_0 : i32, i32, i32
  }
  func.func @transform_1(%arg0: i32) -> (i32, i32) {
    %c0_i32 = arith.constant 0 : i32
    %c0_i32_0 = arith.constant 0 : i32
    %c0_i32_1 = arith.constant 0 : i32
    return %c0_i32, %c0_i32_0 : i32, i32
  }
  func.func @transform_2(%arg0: i32) -> (i32, i32) {
    %c0_i32 = arith.constant 0 : i32
    %c0_i32_0 = arith.constant 0 : i32
    %c0_i32_1 = arith.constant 0 : i32
    return %c0_i32, %c0_i32_0 : i32, i32
  }
  func.func @transform_3(%arg0: i32) -> (i32, i32) {
    %c0_i32 = arith.constant 0 : i32
    %c0_i32_0 = arith.constant 0 : i32
    %c0_i32_1 = arith.constant 0 : i32
    return %c0_i32, %c0_i32_0 : i32, i32
  }
  func.func @transform_4(%arg0: i32) -> (i32, i32) {
    %c0_i32 = arith.constant 0 : i32
    %c0_i32_0 = arith.constant 0 : i32
    %c0_i32_1 = arith.constant 0 : i32
    return %c0_i32, %c0_i32_0 : i32, i32
  }
  func.func @transform_5(%arg0: i32) -> (i32, i32) {
    %c0_i32 = arith.constant 0 : i32
    %c0_i32_0 = arith.constant 0 : i32
    %c0_i32_1 = arith.constant 0 : i32
    return %c0_i32, %c0_i32_0 : i32, i32
  }
  func.func @transform_6(%arg0: i32) -> (i32, i32, i32) {
    %c0_i32 = arith.constant 0 : i32
    %c0_i32_0 = arith.constant 0 : i32
    %c0_i32_1 = arith.constant 0 : i32
    return %arg0, %c0_i32, %c0_i32_0 : i32, i32, i32
  }
}

</mosaic_0001>

<llo_original>
// kernel: tpu_custom_call.1
$region0: #{tpu_custom_call.1}
  #allocation0 [shape = 'u32[]', space=smem, size = 0x4, offset = 0x4, fixed_abs, tag = 'smem constant byte address 0x4 - core index']
  #allocation1 [shape = 'u32[144,128]{1,0:T(1,128)}', space=vmem, size = 0x12000, scoped, tag = 'internal scratch']
  %s0 = inlined_call_operand.hbm [shape: f32[4,16,256], index: 0, kind: input, shape index: {}]
  %s1 = inlined_call_operand.vmem [shape: bf16[16,144], index: 1, kind: input, shape index: {}]
  %s2 = inlined_call_operand.vmem [shape: f32[16,1], index: 2, kind: input, shape index: {}]
  %s3 = inlined_call_operand.vmem [shape: f32[16,1], index: 3, kind: input, shape index: {}]
  %s4 = inlined_call_operand.vmem [shape: f32[16,1], index: 4, kind: input, shape index: {}]
  %s5 = inlined_call_operand.vmem [shape: bf16[9,256], index: 5, kind: input, shape index: {}]
  %s6 = inlined_call_operand.hbm [shape: f32[4,16,256], index: 6, kind: output, shape index: {}]
  %s7 = sld [smem:[#allocation0]]
  $region61: #{tpu_custom_call.1} parent=0
    _
  %s9 = ssub.s32 1, %s7
  %s10 = scalar_select 0, %s9, %s7
  $region1: #{tpu_custom_call.1} parent=0
    #allocation2 [shape = 'u8[65536]{0}', space=vmem, size = 0x10000, scoped, tag = 'input window, operand 0']
    #allocation3 [shape = 's32[2]{0}', space=sflag, size = 0x8, scoped, tag = 'scoped memory for tpu_custom_call.1']
    #allocation4 [shape = 's32[2]{0}', space=sflag, size = 0x8, scoped, tag = 'scoped memory for tpu_custom_call.1']
    #allocation5 [shape = 'u8[65536]{0}', space=vmem, size = 0x10000, scoped, tag = 'output window, operand 0']
    %11 = vsyncpa [#allocation3], 0
    %s12 = scalar_lea.sflag [#allocation3], 1
    %13 = vsyncpa %s12, 0
    %14 = vsyncpa [#allocation4], 0
    %s15 = scalar_lea.sflag [#allocation4], 1
    %16 = vsyncpa %s15, 0
    loop: start=0, step=1, limit=4
    $region2: #{tpu_custom_call.1} parent=1 // loop_pre_header
      _
    $region3: #{tpu_custom_call.1} parent=1 // loop_header
      %s18 = sphi 0, %s22
      %p19 = scmp.ge.s32.totalorder %s18, 4
      %s28 = sphi 0, %s30
      %s31 = sphi 0, %s28
      %s32 = sphi 0, %s31
      %s48 = sphi 0, %s32
      %s52 = sphi 0, %s52
      %s54 = sphi 0, %s52
      %s55 = sphi 0, %s54
      %s69 = sphi 0, %s55
      %s73 = sphi 0, %s73
      %s75 = sphi 0, %s73
      %s76 = sphi 0, %s75
      %s90 = sphi 0, %s76
      %s94 = sphi 0, %s94
      %s96 = sphi 0, %s94
      %s97 = sphi 0, %s96
      %s111 = sphi 0, %s97
      %s115 = sphi 0, %s115
      %s117 = sphi 0, %s115
      %s118 = sphi 0, %s117
      %s132 = sphi 0, %s118
      %s136 = sphi 0, %s136
      %s138 = sphi 0, %s136
      %s139 = sphi 0, %s138
      %s153 = sphi 0, %s139
      %s159 = sphi 0, %s161
      %s162 = sphi 0, %s159
      %s163 = sphi 0, %s162
      %s179 = sphi 0, %s163
    $region4: #{tpu_custom_call.1} parent=1 // loop_header_branch
      %21 = sbr.rel (%p19) target = $region8
    $region5: #{tpu_custom_call.1} parent=1 // loop_body
      %s23 = ssub.s32 %s18, 1
      %s24 = ssub.s32 %s18, 2
      %s25 = sadd.s32 %s18, 1
      %s26 = ssub.s32 %s18, %s25
      %p27 = scmp.eq.s32.totalorder %s26, 0
      %s29 = sadd.s32 %s28, 1
      %s30 = scalar_select %p27, %s28, %s29
      %p33 = pneg %p27
      %p34 = scmp.eq.s32.totalorder %s18, 1
      %p35 = por %p33, %p34
      %p36 = scmp.ne.s32.totalorder %s28, %s31
      %p37 = scmp.eq.s32.totalorder %s18, 0
      %p38 = por %p36, %p37
      %p39 = scmp.ne.s32.totalorder %s28, %s31
      %p40 = scmp.eq.s32.totalorder %s23, 1
      %p41 = por %p39, %p40
      %p42 = scmp.ne.s32.totalorder %s31, %s32
      %p43 = scmp.eq.s32.totalorder %s23, 0
      %p44 = por %p42, %p43
      %p45 = scmp.ne.s32.totalorder %s31, %s32
      %p46 = scmp.eq.s32.totalorder %s24, 1
      %p47 = por %p45, %p46
      %p49 = scmp.ne.s32.totalorder %s32, %s48
      %p50 = scmp.eq.s32.totalorder %s24, 0
      %p51 = por %p49, %p50
      %s53 = sadd.s32 %s52, 1
      %p56 = scmp.eq.s32.totalorder %s18, 1
      %p57 = scmp.ne.s32.totalorder %s52, %s54
      %p58 = scmp.eq.s32.totalorder %s18, 0
      %p59 = por %p57, %p58
      %p60 = scmp.ne.s32.totalorder %s52, %s54
      %p61 = scmp.eq.s32.totalorder %s23, 1
      %p62 = por %p60, %p61
      %p63 = scmp.ne.s32.totalorder %s54, %s55
      %p64 = scmp.eq.s32.totalorder %s23, 0
      %p65 = por %p63, %p64
      %p66 = scmp.ne.s32.totalorder %s54, %s55
      %p67 = scmp.eq.s32.totalorder %s24, 1
      %p68 = por %p66, %p67
      %p70 = scmp.ne.s32.totalorder %s55, %s69
      %p71 = scmp.eq.s32.totalorder %s24, 0
      %p72 = por %p70, %p71
      %s74 = sadd.s32 %s73, 1
      %p77 = scmp.eq.s32.totalorder %s18, 1
      %p78 = scmp.ne.s32.totalorder %s73, %s75
      %p79 = scmp.eq.s32.totalorder %s18, 0
      %p80 = por %p78, %p79
      %p81 = scmp.ne.s32.totalorder %s73, %s75
      %p82 = scmp.eq.s32.totalorder %s23, 1
      %p83 = por %p81, %p82
      %p84 = scmp.ne.s32.totalorder %s75, %s76
      %p85 = scmp.eq.s32.totalorder %s23, 0
      %p86 = por %p84, %p85
      %p87 = scmp.ne.s32.totalorder %s75, %s76
      %p88 = scmp.eq.s32.totalorder %s24, 1
      %p89 = por %p87, %p88
      %p91 = scmp.ne.s32.totalorder %s76, %s90
      %p92 = scmp.eq.s32.totalorder %s24, 0
      %p93 = por %p91, %p92
      %s95 = sadd.s32 %s94, 1
      %p98 = scmp.eq.s32.totalorder %s18, 1
      %p99 = scmp.ne.s32.totalorder %s94, %s96
      %p100 = scmp.eq.s32.totalorder %s18, 0
      %p101 = por %p99, %p100
      %p102 = scmp.ne.s32.totalorder %s94, %s96
      %p103 = scmp.eq.s32.totalorder %s23, 1
      %p104 = por %p102, %p103
      %p105 = scmp.ne.s32.totalorder %s96, %s97
      %p106 = scmp.eq.s32.totalorder %s23, 0
      %p107 = por %p105, %p106
      %p108 = scmp.ne.s32.totalorder %s96, %s97
      %p109 = scmp.eq.s32.totalorder %s24, 1
      %p110 = por %p108, %p109
      %p112 = scmp.ne.s32.totalorder %s97, %s111
      %p113 = scmp.eq.s32.totalorder %s24, 0
      %p114 = por %p112, %p113
      %s116 = sadd.s32 %s115, 1
      %p119 = scmp.eq.s32.totalorder %s18, 1
      %p120 = scmp.ne.s32.totalorder %s115, %s117
      %p121 = scmp.eq.s32.totalorder %s18, 0
      %p122 = por %p120, %p121
      %p123 = scmp.ne.s32.totalorder %s115, %s117
      %p124 = scmp.eq.s32.totalorder %s23, 1
      %p125 = por %p123, %p124
      %p126 = scmp.ne.s32.totalorder %s117, %s118
      %p127 = scmp.eq.s32.totalorder %s23, 0
      %p128 = por %p126, %p127
      %p129 = scmp.ne.s32.totalorder %s117, %s118
      %p130 = scmp.eq.s32.totalorder %s24, 1
      %p131 = por %p129, %p130
      %p133 = scmp.ne.s32.totalorder %s118, %s132
      %p134 = scmp.eq.s32.totalorder %s24, 0
      %p135 = por %p133, %p134
      %s137 = sadd.s32 %s136, 1
      %p140 = scmp.eq.s32.totalorder %s18, 1
      %p141 = scmp.ne.s32.totalorder %s136, %s138
      %p142 = scmp.eq.s32.totalorder %s18, 0
      %p143 = por %p141, %p142
      %p144 = scmp.ne.s32.totalorder %s136, %s138
      %p145 = scmp.eq.s32.totalorder %s23, 1
      %p146 = por %p144, %p145
      %p147 = scmp.ne.s32.totalorder %s138, %s139
      %p148 = scmp.eq.s32.totalorder %s23, 0
      %p149 = por %p147, %p148
      %p150 = scmp.ne.s32.totalorder %s138, %s139
      %p151 = scmp.eq.s32.totalorder %s24, 1
      %p152 = por %p150, %p151
      %p154 = scmp.ne.s32.totalorder %s139, %s153
      %p155 = scmp.eq.s32.totalorder %s24, 0
      %p156 = por %p154, %p155
      %s157 = ssub.s32 %s18, %s25
      %p158 = scmp.eq.s32.totalorder %s157, 0
      %s160 = sadd.s32 %s159, 1
      %s161 = scalar_select %p158, %s159, %s160
      %p164 = pneg %p158
      %p165 = scmp.eq.s32.totalorder %s18, 1
      %p166 = por %p164, %p165
      %p167 = scmp.ne.s32.totalorder %s159, %s162
      %p168 = scmp.eq.s32.totalorder %s18, 0
      %p169 = por %p167, %p168
      %p170 = scmp.ne.s32.totalorder %s159, %s162
      %p171 = scmp.eq.s32.totalorder %s23, 1
      %p172 = por %p170, %p171
      %p173 = scmp.ne.s32.totalorder %s162, %s163
      %p174 = scmp.eq.s32.totalorder %s23, 0
      %p175 = por %p173, %p174
      %p176 = scmp.ne.s32.totalorder %s162, %s163
      %p177 = scmp.eq.s32.totalorder %s24, 1
      %p178 = por %p176, %p177
      %p180 = scmp.ne.s32.totalorder %s163, %s179
      %p181 = scmp.eq.s32.totalorder %s24, 0
      %p182 = por %p180, %p181
      %p183 = scmp.le.s32.totalorder 1, %s18
      %p184 = scmp.lt.s32.totalorder %s18, 3
      %p185 = pnand %p183, %p184
      %p186 = pneg %p185
      // Predicated region
      $region9: #{tpu_custom_call.1} parent=5 // pred_check
        _
      $region10: #{tpu_custom_call.1} parent=5 // pred_check_branch
        %188 = sbr.rel (%p185) target = $region12
      $region11: #{tpu_custom_call.1} parent=5 // pred_region
        %s189 = ssub.s32 %s18, 1
        // Predicated region
        $region13: #{tpu_custom_call.1} parent=11 // pred_check
          %p190 = pneg %p65
        $region14: #{tpu_custom_call.1} parent=11 // pred_check_branch
          %192 = sbr.rel (%p190) target = $region16
        $region15: #{tpu_custom_call.1} parent=11 // pred_region
          _
        $region16: #{tpu_custom_call.1} parent=11 // pred_fallthru
          _
        // Predicated region
        $region17: #{tpu_custom_call.1} parent=11 // pred_check
          %p193 = pneg %p86
        $region18: #{tpu_custom_call.1} parent=11 // pred_check_branch
          %195 = sbr.rel (%p193) target = $region20
        $region19: #{tpu_custom_call.1} parent=11 // pred_region
          _
        $region20: #{tpu_custom_call.1} parent=11 // pred_fallthru
          _
        // Predicated region
        $region21: #{tpu_custom_call.1} parent=11 // pred_check
          %p196 = pneg %p107
        $region22: #{tpu_custom_call.1} parent=11 // pred_check_branch
          %198 = sbr.rel (%p196) target = $region24
        $region23: #{tpu_custom_call.1} parent=11 // pred_region
          _
        $region24: #{tpu_custom_call.1} parent=11 // pred_fallthru
          _
        // Predicated region
        $region25: #{tpu_custom_call.1} parent=11 // pred_check
          %p199 = pneg %p128
        $region26: #{tpu_custom_call.1} parent=11 // pred_check_branch
          %201 = sbr.rel (%p199) target = $region28
        $region27: #{tpu_custom_call.1} parent=11 // pred_region
          _
        $region28: #{tpu_custom_call.1} parent=11 // pred_fallthru
          _
        // Predicated region
        $region29: #{tpu_custom_call.1} parent=11 // pred_check
          %p202 = pneg %p149
        $region30: #{tpu_custom_call.1} parent=11 // pred_check_branch
          %204 = sbr.rel (%p202) target = $region32
        $region31: #{tpu_custom_call.1} parent=11 // pred_region
          _
        $region32: #{tpu_custom_call.1} parent=11 // pred_fallthru
          _
      $region12: #{tpu_custom_call.1} parent=5 // pred_fallthru
        _
      %p205 = scmp.lt.s32.totalorder %s18, 2
      // Predicated region
      $region33: #{tpu_custom_call.1} parent=5 // pred_check
        %p206 = pneg %p205
      $region34: #{tpu_custom_call.1} parent=5 // pred_check_branch
        %208 = sbr.rel (%p206) target = $region36
      $region35: #{tpu_custom_call.1} parent=5 // pred_region
        // Predicated region
        $region37: #{tpu_custom_call.1} parent=35 // pred_check
          %p209 = pneg %p38
        $region38: #{tpu_custom_call.1} parent=35 // pred_check_branch
          %211 = sbr.rel (%p209) target = $region40
        $region39: #{tpu_custom_call.1} parent=35 // pred_region
          %s212 = sand.u32 %s28, 1
          %s213 = scalar_lea.sflag [#allocation3], %s212
          %s214 = sand.u32 %s28, 1
          %s215 = smul.addr %s214, 64
          %s216 = scalar_lea.vmem [#allocation2], %s215
          %s217 = smul.u32 2, %s18
          %s219 = ssub.s32 1024, 1024
          %220 = vsyncadd %s213, %s219
          %s221 = smul.addr %s217, 4
          %s222 = smul.addr %s221, 128
          %s223 = scalar_lea.hbm %s0, %s222
          %s224 = sshll.u32 %s216, 4
          %s225 = int_to_ptr.vmem [resolvable:$true] %s224
          %230 = dma.hbm_to_vmem [thread:$0]  %s223, 1024, %s225, %s213, 256, 256, 16
        $region40: #{tpu_custom_call.1} parent=35 // pred_fallthru
          _
      $region36: #{tpu_custom_call.1} parent=5 // pred_fallthru
        _
      %p231 = scmp.le.s32.totalorder 1, %s18
      %p232 = scmp.lt.s32.totalorder %s18, 3
      %p233 = pnand %p231, %p232
      %p234 = pneg %p233
      // Predicated region
      $region41: #{tpu_custom_call.1} parent=5 // pred_check
        _
      $region42: #{tpu_custom_call.1} parent=5 // pred_check_branch
        %236 = sbr.rel (%p233) target = $region44
      $region43: #{tpu_custom_call.1} parent=5 // pred_region
        %s237 = ssub.s32 %s18, 1
        %s238 = sand.u32 %s31, 1
        %s239 = scalar_lea.sflag [#allocation3], %s238
        %s240 = sand.u32 %s31, 1
        %s241 = smul.addr %s240, 64
        %s242 = scalar_lea.vmem [#allocation2], %s241
        // Predicated region
        $region45: #{tpu_custom_call.1} parent=43 // pred_check
          %p243 = pneg %p44
        $region46: #{tpu_custom_call.1} parent=43 // pred_check_branch
          %245 = sbr.rel (%p243) target = $region48
        $region47: #{tpu_custom_call.1} parent=43 // pred_region
          %246 = dma.done %s239, 1024
        $region48: #{tpu_custom_call.1} parent=43 // pred_fallthru
          _
        %s247 = sand.u32 %s31, 1
        %s248 = scalar_lea.sflag [#allocation3], %s247
        %s249 = sand.u32 %s31, 1
        %s250 = smul.addr %s249, 64
        %s251 = scalar_lea.vmem [#allocation2], %s250
        %p252 = pneg %p44
        %p253 = pneg %p41
        %p254 = pneg %p65
        %p255 = pneg %p62
        %p256 = pneg %p86
        %p257 = pneg %p83
        %p258 = pneg %p107
        %p259 = pneg %p104
        %p260 = pneg %p128
        %p261 = pneg %p125
        %p262 = pneg %p149
        %p263 = pneg %p146
        %p264 = pneg %p175
        %p265 = pneg %p172
        %s266 = sand.u32 %s162, 1
        %s267 = scalar_lea.sflag [#allocation4], %s266
        %s268 = sand.u32 %s162, 1
        %s269 = smul.addr %s268, 64
        %s270 = scalar_lea.vmem [#allocation5], %s269
        %s271 = smul.u32 2, %s23
        %s272 = smul.u32 2, %s23
        %v274 = vld [vmem:[%s242] sm:$0xff]
        %v275 = vld [vmem:[%s242 + $0x8] sm:$0xff]
        %v276 = vld [vmem:[%s242 + $0x10] sm:$0xff]
        %v277 = vld [vmem:[%s242 + $0x18] sm:$0xff]
        %278 = vrot.lane.b32.xlu0 %v274, 17
        %v279 = vpop.permute.xlu0 %278
        %280 = vrot.lane.b32.xlu0 %v276, 17
        %v281 = vpop.permute.xlu0 %280
        %282 = vrot.lane.b32.xlu0 %v275, 17
        %v283 = vpop.permute.xlu0 %282
        %284 = vrot.lane.b32.xlu0 %v277, 17
        %v285 = vpop.permute.xlu0 %284
        %v286 = vlaneseq
        %v287 = vand.u32 %v286, 127
        %vm288 = vcmp.lt.s32.totalorder %v287, 17
        %v289 = vsel %vm288, %v279, %v283
        %v290 = vsel %vm288, %v281, %v285
        %v291 = vsel %vm288, %v283, %v279
        %v292 = vsel %vm288, %v285, %v281
        %v293 = vpack.c.bf16 %v292, %v291
        %v294 = vpack.c.bf16 %v290, %v289
        %v295 = vld [vmem:[%s5] sm:$0x11]
        %v297 = vunpack.c.l.b16 %v295
        %v298 = vunpack.c.h.b16 %v295
        %v299 = vpack.c.b16 %v297, %v297
        %v300 = vpack.c.b16 %v298, %v298
        %v302 = vpack.i.b16 %v299, %v299
        %v304 = vlaneseq
        %v305 = vshrl.u32 %v304, 7
        %v306 = vsub.s32 0, %v305
        %v307 = vrot.slane %v302, %v306
        %v309 = vpack.i.b16 %v300, %v300
        %v311 = vlaneseq
        %v312 = vshrl.u32 %v311, 7
        %v313 = vsub.s32 0, %v312
        %v314 = vrot.slane %v309, %v313
        %v315 = vmul.bf16 %v293, %v307
        %v316 = vmul.bf16 %v294, %v314
        %317 = vrot.lane.b32.xlu0 %v274, 16
        %v318 = vpop.permute.xlu0 %317
        %319 = vrot.lane.b32.xlu0 %v276, 16
        %v320 = vpop.permute.xlu0 %319
        %321 = vrot.lane.b32.xlu0 %v275, 16
        %v322 = vpop.permute.xlu0 %321
        %323 = vrot.lane.b32.xlu0 %v277, 16
        %v324 = vpop.permute.xlu0 %323
        %vm325 = vcmp.lt.s32.totalorder %v287, 16
        %v326 = vsel %vm325, %v318, %v322
        %v327 = vsel %vm325, %v320, %v324
        %v328 = vsel %vm325, %v322, %v318
        %v329 = vsel %vm325, %v324, %v320
        %v330 = vpack.c.bf16 %v329, %v328
        %v331 = vpack.c.bf16 %v327, %v326
        %v332 = vshrl.u32 %v299, 16
        %v333 = vpack.i.b16 %v332, %v332
        %v335 = vlaneseq
        %v336 = vshrl.u32 %v335, 7
        %v337 = vsub.s32 0, %v336
        %v338 = vrot.slane %v333, %v337
        %v339 = vshrl.u32 %v300, 16
        %v340 = vpack.i.b16 %v339, %v339
        %v342 = vlaneseq
        %v343 = vshrl.u32 %v342, 7
        %v344 = vsub.s32 0, %v343
        %v345 = vrot.slane %v340, %v344
        %v346 = vmul.bf16 %v330, %v338
        %v347 = vmul.bf16 %v331, %v345
        %348 = vrot.lane.b32.xlu0 %v274, 15
        %v349 = vpop.permute.xlu0 %348
        %350 = vrot.lane.b32.xlu0 %v276, 15
        %v351 = vpop.permute.xlu0 %350
        %352 = vrot.lane.b32.xlu0 %v275, 15
        %v353 = vpop.permute.xlu0 %352
        %354 = vrot.lane.b32.xlu0 %v277, 15
        %v355 = vpop.permute.xlu0 %354
        %vm356 = vcmp.lt.s32.totalorder %v287, 15
        %v357 = vsel %vm356, %v349, %v353
        %v358 = vsel %vm356, %v351, %v355
        %v359 = vsel %vm356, %v353, %v349
        %v360 = vsel %vm356, %v355, %v351
        %v361 = vpack.c.bf16 %v360, %v359
        %v362 = vpack.c.bf16 %v358, %v357
        %v363 = vld [vmem:[%s5] sm:$0x22]
        %v365 = vunpack.c.l.b16 %v363
        %v366 = vunpack.c.h.b16 %v363
        %v367 = vpack.c.b16 %v365, %v365
        %v368 = vpack.c.b16 %v366, %v366
        %v370 = vpack.i.b16 %v367, %v367
        %v372 = vlaneseq
        %v373 = vshrl.u32 %v372, 7
        %v374 = vsub.s32 1, %v373
        %v375 = vrot.slane %v370, %v374
        %v377 = vpack.i.b16 %v368, %v368
        %v379 = vlaneseq
        %v380 = vshrl.u32 %v379, 7
        %v381 = vsub.s32 1, %v380
        %v382 = vrot.slane %v377, %v381
        %v383 = vmul.bf16 %v361, %v375
        %v384 = vmul.bf16 %v362, %v382
        %385 = vrot.lane.b32.xlu0 %v274, 1
        %v386 = vpop.permute.xlu0 %385
        %387 = vrot.lane.b32.xlu0 %v276, 1
        %v388 = vpop.permute.xlu0 %387
        %389 = vrot.lane.b32.xlu0 %v275, 1
        %v390 = vpop.permute.xlu0 %389
        %391 = vrot.lane.b32.xlu0 %v277, 1
        %v392 = vpop.permute.xlu0 %391
        %vm393 = vcmp.lt.s32.totalorder %v287, 1
        %v394 = vsel %vm393, %v386, %v390
        %v395 = vsel %vm393, %v388, %v392
        %v396 = vsel %vm393, %v390, %v386
        %v397 = vsel %vm393, %v392, %v388
        %v398 = vpack.c.bf16 %v397, %v396
        %v399 = vpack.c.bf16 %v395, %v394
        %v400 = vshrl.u32 %v367, 16
        %v401 = vpack.i.b16 %v400, %v400
        %v403 = vlaneseq
        %v404 = vshrl.u32 %v403, 7
        %v405 = vsub.s32 1, %v404
        %v406 = vrot.slane %v401, %v405
        %v407 = vshrl.u32 %v368, 16
        %v408 = vpack.i.b16 %v407, %v407
        %v410 = vlaneseq
        %v411 = vshrl.u32 %v410, 7
        %v412 = vsub.s32 1, %v411
        %v413 = vrot.slane %v408, %v412
        %v414 = vmul.bf16 %v398, %v406
        %v415 = vmul.bf16 %v399, %v413
        %v416 = vpack.c.bf16 %v276, %v274
        %v417 = vpack.c.bf16 %v277, %v275
        %418 = vrot.lane.b32.xlu0 %v274, 127
        %v419 = vpop.permute.xlu0 %418
        %420 = vrot.lane.b32.xlu0 %v276, 127
        %v421 = vpop.permute.xlu0 %420
        %422 = vrot.lane.b32.xlu0 %v275, 127
        %v423 = vpop.permute.xlu0 %422
        %424 = vrot.lane.b32.xlu0 %v277, 127
        %v425 = vpop.permute.xlu0 %424
        %vm426 = vcmp.lt.s32.totalorder %v287, 127
        %v427 = vsel %vm426, %v419, %v423
        %v428 = vsel %vm426, %v421, %v425
        %v429 = vsel %vm426, %v423, %v419
        %v430 = vsel %vm426, %v425, %v421
        %v431 = vpack.c.bf16 %v428, %v427
        %v432 = vpack.c.bf16 %v430, %v429
        %v433 = vld [vmem:[%s5] sm:$0x44]
        %v435 = vunpack.c.l.b16 %v433
        %v436 = vunpack.c.h.b16 %v433
        %v437 = vpack.c.b16 %v435, %v435
        %v438 = vpack.c.b16 %v436, %v436
        %v440 = vshrl.u32 %v437, 16
        %v441 = vpack.i.b16 %v440, %v440
        %v443 = vlaneseq
        %v444 = vshrl.u32 %v443, 7
        %v445 = vsub.s32 2, %v444
        %v446 = vrot.slane %v441, %v445
        %v448 = vshrl.u32 %v438, 16
        %v449 = vpack.i.b16 %v448, %v448
        %v451 = vlaneseq
        %v452 = vshrl.u32 %v451, 7
        %v453 = vsub.s32 2, %v452
        %v454 = vrot.slane %v449, %v453
        %v455 = vmul.bf16 %v431, %v446
        %v456 = vmul.bf16 %v432, %v454
        %457 = vrot.lane.b32.xlu0 %v274, 113
        %v458 = vpop.permute.xlu0 %457
        %459 = vrot.lane.b32.xlu0 %v276, 113
        %v460 = vpop.permute.xlu0 %459
        %461 = vrot.lane.b32.xlu0 %v275, 113
        %v462 = vpop.permute.xlu0 %461
        %463 = vrot.lane.b32.xlu0 %v277, 113
        %v464 = vpop.permute.xlu0 %463
        %vm465 = vcmp.lt.s32.totalorder %v287, 113
        %v466 = vsel %vm465, %v458, %v462
        %v467 = vsel %vm465, %v460, %v464
        %v468 = vsel %vm465, %v462, %v458
        %v469 = vsel %vm465, %v464, %v460
        %v470 = vpack.c.bf16 %v467, %v466
        %v471 = vpack.c.bf16 %v469, %v468
        %v472 = vld [vmem:[%s5] sm:$0x88]
        %v474 = vunpack.c.l.b16 %v472
        %v475 = vunpack.c.h.b16 %v472
        %v476 = vpack.c.b16 %v474, %v474
        %v477 = vpack.c.b16 %v475, %v475
        %v479 = vpack.i.b16 %v476, %v476
        %v481 = vlaneseq
        %v482 = vshrl.u32 %v481, 7
        %v483 = vsub.s32 3, %v482
        %v484 = vrot.slane %v479, %v483
        %v486 = vpack.i.b16 %v477, %v477
        %v488 = vlaneseq
        %v489 = vshrl.u32 %v488, 7
        %v490 = vsub.s32 3, %v489
        %v491 = vrot.slane %v486, %v490
        %v492 = vmul.bf16 %v470, %v484
        %v493 = vmul.bf16 %v471, %v491
        %494 = vrot.lane.b32.xlu0 %v274, 112
        %v495 = vpop.permute.xlu0 %494
        %496 = vrot.lane.b32.xlu0 %v276, 112
        %v497 = vpop.permute.xlu0 %496
        %498 = vrot.lane.b32.xlu0 %v275, 112
        %v499 = vpop.permute.xlu0 %498
        %500 = vrot.lane.b32.xlu0 %v277, 112
        %v501 = vpop.permute.xlu0 %500
        %vm502 = vcmp.lt.s32.totalorder %v287, 112
        %v503 = vsel %vm502, %v495, %v499
        %v504 = vsel %vm502, %v497, %v501
        %v505 = vsel %vm502, %v499, %v495
        %v506 = vsel %vm502, %v501, %v497
        %v507 = vpack.c.bf16 %v504, %v503
        %v508 = vpack.c.bf16 %v506, %v505
        %v509 = vshrl.u32 %v476, 16
        %v510 = vpack.i.b16 %v509, %v509
        %v512 = vlaneseq
        %v513 = vshrl.u32 %v512, 7
        %v514 = vsub.s32 3, %v513
        %v515 = vrot.slane %v510, %v514
        %v516 = vshrl.u32 %v477, 16
        %v517 = vpack.i.b16 %v516, %v516
        %v519 = vlaneseq
        %v520 = vshrl.u32 %v519, 7
        %v521 = vsub.s32 3, %v520
        %v522 = vrot.slane %v517, %v521
        %v523 = vmul.bf16 %v507, %v515
        %v524 = vmul.bf16 %v508, %v522
        %525 = vrot.lane.b32.xlu0 %v274, 111
        %v526 = vpop.permute.xlu0 %525
        %527 = vrot.lane.b32.xlu0 %v276, 111
        %v528 = vpop.permute.xlu0 %527
        %529 = vrot.lane.b32.xlu0 %v275, 111
        %v530 = vpop.permute.xlu0 %529
        %531 = vrot.lane.b32.xlu0 %v277, 111
        %v532 = vpop.permute.xlu0 %531
        %vm533 = vcmp.lt.s32.totalorder %v287, 111
        %v534 = vsel %vm533, %v526, %v530
        %v535 = vsel %vm533, %v528, %v532
        %v536 = vsel %vm533, %v530, %v526
        %v537 = vsel %vm533, %v532, %v528
        %v538 = vpack.c.bf16 %v535, %v534
        %v539 = vpack.c.bf16 %v537, %v536
        %v540 = vld [vmem:[%s5 + $0x8] sm:$0x11]
        %v542 = vunpack.c.l.b16 %v540
        %v543 = vunpack.c.h.b16 %v540
        %v544 = vpack.c.b16 %v542, %v542
        %v545 = vpack.c.b16 %v543, %v543
        %v547 = vpack.i.b16 %v544, %v544
        %v549 = vlaneseq
        %v550 = vshrl.u32 %v549, 7
        %v551 = vsub.s32 0, %v550
        %v552 = vrot.slane %v547, %v551
        %v554 = vpack.i.b16 %v545, %v545
        %v556 = vlaneseq
        %v557 = vshrl.u32 %v556, 7
        %v558 = vsub.s32 0, %v557
        %v559 = vrot.slane %v554, %v558
        %v560 = vmul.bf16 %v538, %v552
        %v561 = vmul.bf16 %v539, %v559
        %s562 = scalar_lea.vmem %s242, 32 [#allocation2]
        %v563 = vld [vmem:[%s562] sm:$0xff]
        %v564 = vld [vmem:[%s562 + $0x8] sm:$0xff]
        %v565 = vld [vmem:[%s562 + $0x10] sm:$0xff]
        %v566 = vld [vmem:[%s562 + $0x18] sm:$0xff]
        %567 = vrot.lane.b32.xlu0 %v563, 17
        %v568 = vpop.permute.xlu0 %567
        %569 = vrot.lane.b32.xlu0 %v565, 17
        %v570 = vpop.permute.xlu0 %569
        %571 = vrot.lane.b32.xlu0 %v564, 17
        %v572 = vpop.permute.xlu0 %571
        %573 = vrot.lane.b32.xlu0 %v566, 17
        %v574 = vpop.permute.xlu0 %573
        %v575 = vsel %vm288, %v568, %v572
        %v576 = vsel %vm288, %v570, %v574
        %v577 = vsel %vm288, %v572, %v568
        %v578 = vsel %vm288, %v574, %v570
        %v579 = vpack.c.bf16 %v578, %v577
        %v580 = vpack.c.bf16 %v576, %v575
        %v581 = vmul.bf16 %v579, %v307
        %v582 = vmul.bf16 %v580, %v314
        %583 = vrot.lane.b32.xlu0 %v563, 16
        %v584 = vpop.permute.xlu0 %583
        %585 = vrot.lane.b32.xlu0 %v565, 16
        %v586 = vpop.permute.xlu0 %585
        %587 = vrot.lane.b32.xlu0 %v564, 16
        %v588 = vpop.permute.xlu0 %587
        %589 = vrot.lane.b32.xlu0 %v566, 16
        %v590 = vpop.permute.xlu0 %589
        %v591 = vsel %vm325, %v584, %v588
        %v592 = vsel %vm325, %v586, %v590
        %v593 = vsel %vm325, %v588, %v584
        %v594 = vsel %vm325, %v590, %v586
        %v595 = vpack.c.bf16 %v594, %v593
        %v596 = vpack.c.bf16 %v592, %v591
        %v597 = vmul.bf16 %v595, %v338
        %v598 = vmul.bf16 %v596, %v345
        %599 = vrot.lane.b32.xlu0 %v563, 15
        %v600 = vpop.permute.xlu0 %599
        %601 = vrot.lane.b32.xlu0 %v565, 15
        %v602 = vpop.permute.xlu0 %601
        %603 = vrot.lane.b32.xlu0 %v564, 15
        %v604 = vpop.permute.xlu0 %603
        %605 = vrot.lane.b32.xlu0 %v566, 15
        %v606 = vpop.permute.xlu0 %605
        %v607 = vsel %vm356, %v600, %v604
        %v608 = vsel %vm356, %v602, %v606
        %v609 = vsel %vm356, %v604, %v600
        %v610 = vsel %vm356, %v606, %v602
        %v611 = vpack.c.bf16 %v610, %v609
        %v612 = vpack.c.bf16 %v608, %v607
        %v613 = vmul.bf16 %v611, %v375
        %v614 = vmul.bf16 %v612, %v382
        %615 = vrot.lane.b32.xlu0 %v563, 1
        %v616 = vpop.permute.xlu0 %615
        %617 = vrot.lane.b32.xlu0 %v565, 1
        %v618 = vpop.permute.xlu0 %617
        %619 = vrot.lane.b32.xlu0 %v564, 1
        %v620 = vpop.permute.xlu0 %619
        %621 = vrot.lane.b32.xlu0 %v566, 1
        %v622 = vpop.permute.xlu0 %621
        %v623 = vsel %vm393, %v616, %v620
        %v624 = vsel %vm393, %v618, %v622
        %v625 = vsel %vm393, %v620, %v616
        %v626 = vsel %vm393, %v622, %v618
        %v627 = vpack.c.bf16 %v626, %v625
        %v628 = vpack.c.bf16 %v624, %v623
        %v629 = vmul.bf16 %v627, %v406
        %v630 = vmul.bf16 %v628, %v413
        %v631 = vpack.c.bf16 %v565, %v563
        %v632 = vpack.c.bf16 %v566, %v564
        %633 = vrot.lane.b32.xlu0 %v563, 127
        %v634 = vpop.permute.xlu0 %633
        %635 = vrot.lane.b32.xlu0 %v565, 127
        %v636 = vpop.permute.xlu0 %635
        %637 = vrot.lane.b32.xlu0 %v564, 127
        %v638 = vpop.permute.xlu0 %637
        %639 = vrot.lane.b32.xlu0 %v566, 127
        %v640 = vpop.permute.xlu0 %639
        %v641 = vsel %vm426, %v634, %v638
        %v642 = vsel %vm426, %v636, %v640
        %v643 = vsel %vm426, %v638, %v634
        %v644 = vsel %vm426, %v640, %v636
        %v645 = vpack.c.bf16 %v642, %v641
        %v646 = vpack.c.bf16 %v644, %v643
        %v647 = vmul.bf16 %v645, %v446
        %v648 = vmul.bf16 %v646, %v454
        %649 = vrot.lane.b32.xlu0 %v563, 113
        %v650 = vpop.permute.xlu0 %649
        %651 = vrot.lane.b32.xlu0 %v565, 113
        %v652 = vpop.permute.xlu0 %651
        %653 = vrot.lane.b32.xlu0 %v564, 113
        %v654 = vpop.permute.xlu0 %653
        %655 = vrot.lane.b32.xlu0 %v566, 113
        %v656 = vpop.permute.xlu0 %655
        %v657 = vsel %vm465, %v650, %v654
        %v658 = vsel %vm465, %v652, %v656
        %v659 = vsel %vm465, %v654, %v650
        %v660 = vsel %vm465, %v656, %v652
        %v661 = vpack.c.bf16 %v658, %v657
        %v662 = vpack.c.bf16 %v660, %v659
        %v663 = vmul.bf16 %v661, %v484
        %v664 = vmul.bf16 %v662, %v491
        %665 = vrot.lane.b32.xlu0 %v563, 112
        %v666 = vpop.permute.xlu0 %665
        %667 = vrot.lane.b32.xlu0 %v565, 112
        %v668 = vpop.permute.xlu0 %667
        %669 = vrot.lane.b32.xlu0 %v564, 112
        %v670 = vpop.permute.xlu0 %669
        %671 = vrot.lane.b32.xlu0 %v566, 112
        %v672 = vpop.permute.xlu0 %671
        %v673 = vsel %vm502, %v666, %v670
        %v674 = vsel %vm502, %v668, %v672
        %v675 = vsel %vm502, %v670, %v666
        %v676 = vsel %vm502, %v672, %v668
        %v677 = vpack.c.bf16 %v674, %v673
        %v678 = vpack.c.bf16 %v676, %v675
        %v679 = vmul.bf16 %v677, %v515
        %v680 = vmul.bf16 %v678, %v522
        %681 = vrot.lane.b32.xlu0 %v563, 111
        %v682 = vpop.permute.xlu0 %681
        %683 = vrot.lane.b32.xlu0 %v565, 111
        %v684 = vpop.permute.xlu0 %683
        %685 = vrot.lane.b32.xlu0 %v564, 111
        %v686 = vpop.permute.xlu0 %685
        %687 = vrot.lane.b32.xlu0 %v566, 111
        %v688 = vpop.permute.xlu0 %687
        %v689 = vsel %vm533, %v682, %v686
        %v690 = vsel %vm533, %v684, %v688
        %v691 = vsel %vm533, %v686, %v682
        %v692 = vsel %vm533, %v688, %v684
        %v693 = vpack.c.bf16 %v690, %v689
        %v694 = vpack.c.bf16 %v692, %v691
        %v695 = vmul.bf16 %v693, %v552
        %v696 = vmul.bf16 %v694, %v559
        %v697 = vld [vmem:[%s1] sm:$0xff]
        %v698 = vld [vmem:[%s1 + $0x8] sm:$0xff]
        %v699 = vld [vmem:[%s2] sm:$0xff]
        %v700 = vld [vmem:[%s2 + $0x8] sm:$0xff]
        %702 = vset.pattern.permute.xlu0 0
        %703 = vperm.xlu0 %702, %v699
        %v704 = vpop.permute.xlu0 %703
        %707 = vset.pattern.permute.xlu0 0
        %708 = vperm.xlu0 %707, %v700
        %v709 = vpop.permute.xlu0 %708
        %v713 = vunpack.c.l.b16 %v697
        %v714 = vunpack.c.h.b16 %v697
        %v715 = vunpack.c.l.b16 %v698
        %v716 = vunpack.c.h.b16 %v698
        %v717 = vpack.c.b16 %v715, %v713
        %v718 = vpack.c.b16 %v716, %v714
        %vm720 = vcmask 130048
        %v722 = vsel %vm720, %v718, 0
        %724 = vmatprep.subr.bf16.mxu0 %v316
        %725 = vmatpush1.bf16.msra.mxu0 %v315
        %726 = vmatprep.subr.bf16.mxu0 %v347
        %727 = vmatpush1.bf16.msra.mxu0 %v346
        %728 = vmatprep.subr.bf16.mxu0 %v384
        %729 = vmatpush1.bf16.msra.mxu0 %v383
        %730 = vmatprep.subr.bf16.mxu0 %v415
        %731 = vmatpush1.bf16.msra.mxu0 %v414
        %732 = vmatprep.subr.bf16.mxu0 %v417
        %733 = vmatpush1.bf16.msra.mxu0 %v416
        %734 = vmatprep.subr.bf16.mxu0 %v456
        %735 = vmatpush1.bf16.msra.mxu0 %v455
        %736 = vmatprep.subr.bf16.mxu0 %v493
        %737 = vmatpush1.bf16.msra.mxu0 %v492
        %738 = vmatprep.subr.bf16.mxu0 %v524
        %739 = vmatpush1.bf16.msra.mxu0 %v523
        %740 = vmatprep.subr.bf16.mxu0 %v561
        %741 = vmatpush1.bf16.msra.mxu0 %v560
        %742 = vmatprep.subr.bf16.mxu0 0
        %743 = vmatpush1.bf16.msra.mxu0 0
        %744 = vmatprep.subr.bf16.mxu0 0
        %745 = vmatpush1.bf16.msra.mxu0 0
        %746 = vmatprep.subr.bf16.mxu0 0
        %747 = vmatpush1.bf16.msra.mxu0 0
        %748 = vmatprep.subr.bf16.mxu0 0
        %749 = vmatpush1.bf16.msra.mxu0 0
        %750 = vmatprep.subr.bf16.mxu0 0
        %751 = vmatpush1.bf16.msra.mxu0 0
        %752 = vmatprep.subr.bf16.mxu0 0
        %753 = vmatpush1.bf16.msra.mxu0 0
        %754 = vmatprep.subr.bf16.mxu0 0
        %755 = vmatpush1.bf16.msra.mxu0 0
        %756 = vmatprep.mubr.bf16.mxu0 %v722
        %757 = vmatmul.mubr.bf16.gmra.mrb[0].mxu0 %v717
        %v758 = vpop.f32.mrb[0].mxu0
        %v759 = vadd.f32 %v704, %v758
        %v760 = vpop.f32.mrb[0].mxu0
        %v761 = vadd.f32 %v704, %v760
        %v762 = vpop.f32.mrb[0].mxu0
        %v763 = vadd.f32 %v709, %v762
        %v764 = vpop.f32.mrb[0].mxu0
        %v765 = vadd.f32 %v709, %v764
        %766 = vdwg.mxu0
        %767 = vmatprep.subr.bf16.mxu0 %v582
        %768 = vmatpush1.bf16.msra.mxu0 %v581
        %769 = vmatprep.subr.bf16.mxu0 %v598
        %770 = vmatpush1.bf16.msra.mxu0 %v597
        %771 = vmatprep.subr.bf16.mxu0 %v614
        %772 = vmatpush1.bf16.msra.mxu0 %v613
        %773 = vmatprep.subr.bf16.mxu0 %v630
        %774 = vmatpush1.bf16.msra.mxu0 %v629
        %775 = vmatprep.subr.bf16.mxu0 %v632
        %776 = vmatpush1.bf16.msra.mxu0 %v631
        %777 = vmatprep.subr.bf16.mxu0 %v648
        %778 = vmatpush1.bf16.msra.mxu0 %v647
        %779 = vmatprep.subr.bf16.mxu0 %v664
        %780 = vmatpush1.bf16.msra.mxu0 %v663
        %781 = vmatprep.subr.bf16.mxu0 %v680
        %782 = vmatpush1.bf16.msra.mxu0 %v679
        %783 = vmatprep.subr.bf16.mxu0 %v696
        %784 = vmatpush1.bf16.msra.mxu0 %v695
        %785 = vmatprep.subr.bf16.mxu0 0
        %786 = vmatpush1.bf16.msra.mxu0 0
        %787 = vmatprep.subr.bf16.mxu0 0
        %788 = vmatpush1.bf16.msra.mxu0 0
        %789 = vmatprep.subr.bf16.mxu0 0
        %790 = vmatpush1.bf16.msra.mxu0 0
        %791 = vmatprep.subr.bf16.mxu0 0
        %792 = vmatpush1.bf16.msra.mxu0 0
        %793 = vmatprep.subr.bf16.mxu0 0
        %794 = vmatpush1.bf16.msra.mxu0 0
        %795 = vmatprep.subr.bf16.mxu0 0
        %796 = vmatpush1.bf16.msra.mxu0 0
        %797 = vmatprep.subr.bf16.mxu0 0
        %798 = vmatpush1.bf16.msra.mxu0 0
        %799 = vmatprep.mubr.bf16.mxu0 %v722
        %800 = vmatmul.mubr.bf16.gmra.mrb[0].mxu0 %v717
        %v801 = vpop.f32.mrb[0].mxu0
        %v802 = vadd.f32 %v704, %v801
        %v803 = vpop.f32.mrb[0].mxu0
        %v804 = vadd.f32 %v704, %v803
        %v805 = vpop.f32.mrb[0].mxu0
        %v806 = vadd.f32 %v709, %v805
        %v807 = vpop.f32.mrb[0].mxu0
        %v808 = vadd.f32 %v709, %v807
        %809 = vdwg.mxu0
        %v810 = vld [vmem:[%s3] sm:$0xff]
        %v811 = vld [vmem:[%s3 + $0x8] sm:$0xff]
        %v812 = vld [vmem:[%s4] sm:$0xff]
        %v813 = vld [vmem:[%s4 + $0x8] sm:$0xff]
        %v814 = vadd.f32 %v759, %v761
        %815 = vadd.xlane.f32.xlu0 %v814
        %v816 = vpop.xlane.xlu0 %815
        %v817 = vadd.f32 %v763, %v765
        %818 = vadd.xlane.f32.xlu0 %v817
        %v819 = vpop.xlane.xlu0 %818
        %v820 = vmul.f32 %v759, %v759
        %v821 = vmul.f32 %v761, %v761
        %v822 = vmul.f32 %v763, %v763
        %v823 = vmul.f32 %v765, %v765
        %v824 = vadd.f32 %v820, %v821
        %825 = vadd.xlane.f32.xlu0 %v824
        %v826 = vpop.xlane.xlu0 %825
        %v827 = vadd.f32 %v822, %v823
        %828 = vadd.xlane.f32.xlu0 %v827
        %v829 = vpop.xlane.xlu0 %828
        %vm830 = vcmask 1041408
        %v831 = vsel %vm830, %v816, 0.0
        %v832 = vrot.slane %v831, 4
        %v833 = vadd.f32 %v831, %v832
        %v834 = vrot.slane %v833, 2
        %v835 = vadd.f32 %v833, %v834
        %v836 = vrot.slane %v835, 1
        %v837 = vadd.f32 %v835, %v836
        %v838 = vsel %vm830, %v826, 0.0
        %v839 = vrot.slane %v838, 4
        %v840 = vadd.f32 %v838, %v839
        %v841 = vrot.slane %v840, 2
        %v842 = vadd.f32 %v840, %v841
        %v843 = vrot.slane %v842, 1
        %v844 = vadd.f32 %v842, %v843
        %v845 = vmul.f32 %v837, 0.001953125
        %v846 = vmul.f32 %v844, 0.001953125
        %v847 = vmul.f32 %v845, %v845
        %v848 = vsub.f32 %v846, %v847
        %v849 = vadd.f32 %v848, 1e-05
        %v850 = vrsqrt.pop %v849
        %v851 = vmul.f32 %v810, %v850
        %v852 = vmul.f32 %v845, %v851
        %v853 = vsub.f32 %v812, %v852
        %v855 = vrot.slane %v816, 2
        %v857 = vsel %vm830, %v855, 0.0
        %v858 = vrot.slane %v857, 4
        %v859 = vadd.f32 %v857, %v858
        %v860 = vrot.slane %v859, 2
        %v861 = vadd.f32 %v859, %v860
        %v862 = vrot.slane %v861, 1
        %v863 = vadd.f32 %v861, %v862
        %v865 = vrot.slane %v826, 2
        %v867 = vsel %vm830, %v865, 0.0
        %v868 = vrot.slane %v867, 4
        %v869 = vadd.f32 %v867, %v868
        %v870 = vrot.slane %v869, 2
        %v871 = vadd.f32 %v869, %v870
        %v872 = vrot.slane %v871, 1
        %v873 = vadd.f32 %v871, %v872
        %v874 = vmul.f32 %v863, 0.001953125
        %v875 = vmul.f32 %v873, 0.001953125
        %v876 = vmul.f32 %v874, %v874
        %v877 = vsub.f32 %v875, %v876
        %v878 = vadd.f32 %v877, 1e-05
        %v879 = vrsqrt.pop %v878
        %v880 = vmul.f32 %v810, %v879
        %v881 = vmul.f32 %v874, %v880
        %v882 = vsub.f32 %v812, %v881
        %v883 = vrot.slane %v816, 4
        %v885 = vsel %vm830, %v883, 0.0
        %v886 = vrot.slane %v885, 4
        %v887 = vadd.f32 %v885, %v886
        %v888 = vrot.slane %v887, 2
        %v889 = vadd.f32 %v887, %v888
        %v890 = vrot.slane %v889, 1
        %v891 = vadd.f32 %v889, %v890
        %v892 = vrot.slane %v826, 4
        %v894 = vsel %vm830, %v892, 0.0
        %v895 = vrot.slane %v894, 4
        %v896 = vadd.f32 %v894, %v895
        %v897 = vrot.slane %v896, 2
        %v898 = vadd.f32 %v896, %v897
        %v899 = vrot.slane %v898, 1
        %v900 = vadd.f32 %v898, %v899
        %v901 = vmul.f32 %v891, 0.001953125
        %v902 = vmul.f32 %v900, 0.001953125
        %v903 = vmul.f32 %v901, %v901
        %v904 = vsub.f32 %v902, %v903
        %v905 = vadd.f32 %v904, 1e-05
        %v906 = vrsqrt.pop %v905
        %v907 = vmul.f32 %v810, %v906
        %v908 = vmul.f32 %v901, %v907
        %v909 = vsub.f32 %v812, %v908
        %v910 = vrot.slane %v816, 6
        %v912 = vsel %vm830, %v910, 0.0
        %v913 = vrot.slane %v912, 4
        %v914 = vadd.f32 %v912, %v913
        %v915 = vrot.slane %v914, 2
        %v916 = vadd.f32 %v914, %v915
        %v917 = vrot.slane %v916, 1
        %v918 = vadd.f32 %v916, %v917
        %v919 = vrot.slane %v826, 6
        %v921 = vsel %vm830, %v919, 0.0
        %v922 = vrot.slane %v921, 4
        %v923 = vadd.f32 %v921, %v922
        %v924 = vrot.slane %v923, 2
        %v925 = vadd.f32 %v923, %v924
        %v926 = vrot.slane %v925, 1
        %v927 = vadd.f32 %v925, %v926
        %v928 = vmul.f32 %v918, 0.001953125
        %v929 = vmul.f32 %v927, 0.001953125
        %v930 = vmul.f32 %v928, %v928
        %v931 = vsub.f32 %v929, %v930
        %v932 = vadd.f32 %v931, 1e-05
        %v933 = vrsqrt.pop %v932
        %v934 = vmul.f32 %v810, %v933
        %v935 = vmul.f32 %v928, %v934
        %v936 = vsub.f32 %v812, %v935
        %v937 = vsel %vm830, %v819, 0.0
        %v938 = vrot.slane %v937, 4
        %v939 = vadd.f32 %v937, %v938
        %v940 = vrot.slane %v939, 2
        %v941 = vadd.f32 %v939, %v940
        %v942 = vrot.slane %v941, 1
        %v943 = vadd.f32 %v941, %v942
        %v944 = vsel %vm830, %v829, 0.0
        %v945 = vrot.slane %v944, 4
        %v946 = vadd.f32 %v944, %v945
        %v947 = vrot.slane %v946, 2
        %v948 = vadd.f32 %v946, %v947
        %v949 = vrot.slane %v948, 1
        %v950 = vadd.f32 %v948, %v949
        %v951 = vmul.f32 %v943, 0.001953125
        %v952 = vmul.f32 %v950, 0.001953125
        %v953 = vmul.f32 %v951, %v951
        %v954 = vsub.f32 %v952, %v953
        %v955 = vadd.f32 %v954, 1e-05
        %v956 = vrsqrt.pop %v955
        %v957 = vmul.f32 %v811, %v956
        %v958 = vmul.f32 %v951, %v957
        %v959 = vsub.f32 %v813, %v958
        %v961 = vrot.slane %v819, 2
        %v963 = vsel %vm830, %v961, 0.0
        %v964 = vrot.slane %v963, 4
        %v965 = vadd.f32 %v963, %v964
        %v966 = vrot.slane %v965, 2
        %v967 = vadd.f32 %v965, %v966
        %v968 = vrot.slane %v967, 1
        %v969 = vadd.f32 %v967, %v968
        %v971 = vrot.slane %v829, 2
        %v973 = vsel %vm830, %v971, 0.0
        %v974 = vrot.slane %v973, 4
        %v975 = vadd.f32 %v973, %v974
        %v976 = vrot.slane %v975, 2
        %v977 = vadd.f32 %v975, %v976
        %v978 = vrot.slane %v977, 1
        %v979 = vadd.f32 %v977, %v978
        %v980 = vmul.f32 %v969, 0.001953125
        %v981 = vmul.f32 %v979, 0.001953125
        %v982 = vmul.f32 %v980, %v980
        %v983 = vsub.f32 %v981, %v982
        %v984 = vadd.f32 %v983, 1e-05
        %v985 = vrsqrt.pop %v984
        %v986 = vmul.f32 %v811, %v985
        %v987 = vmul.f32 %v980, %v986
        %v988 = vsub.f32 %v813, %v987
        %v989 = vrot.slane %v819, 4
        %v991 = vsel %vm830, %v989, 0.0
        %v992 = vrot.slane %v991, 4
        %v993 = vadd.f32 %v991, %v992
        %v994 = vrot.slane %v993, 2
        %v995 = vadd.f32 %v993, %v994
        %v996 = vrot.slane %v995, 1
        %v997 = vadd.f32 %v995, %v996
        %v998 = vrot.slane %v829, 4
        %v1000 = vsel %vm830, %v998, 0.0
        %v1001 = vrot.slane %v1000, 4
        %v1002 = vadd.f32 %v1000, %v1001
        %v1003 = vrot.slane %v1002, 2
        %v1004 = vadd.f32 %v1002, %v1003
        %v1005 = vrot.slane %v1004, 1
        %v1006 = vadd.f32 %v1004, %v1005
        %v1007 = vmul.f32 %v997, 0.001953125
        %v1008 = vmul.f32 %v1006, 0.001953125
        %v1009 = vmul.f32 %v1007, %v1007
        %v1010 = vsub.f32 %v1008, %v1009
        %v1011 = vadd.f32 %v1010, 1e-05
        %v1012 = vrsqrt.pop %v1011
        %v1013 = vmul.f32 %v811, %v1012
        %v1014 = vmul.f32 %v1007, %v1013
        %v1015 = vsub.f32 %v813, %v1014
        %v1016 = vrot.slane %v819, 6
        %v1018 = vsel %vm830, %v1016, 0.0
        %v1019 = vrot.slane %v1018, 4
        %v1020 = vadd.f32 %v1018, %v1019
        %v1021 = vrot.slane %v1020, 2
        %v1022 = vadd.f32 %v1020, %v1021
        %v1023 = vrot.slane %v1022, 1
        %v1024 = vadd.f32 %v1022, %v1023
        %v1025 = vrot.slane %v829, 6
        %v1027 = vsel %vm830, %v1025, 0.0
        %v1028 = vrot.slane %v1027, 4
        %v1029 = vadd.f32 %v1027, %v1028
        %v1030 = vrot.slane %v1029, 2
        %v1031 = vadd.f32 %v1029, %v1030
        %v1032 = vrot.slane %v1031, 1
        %v1033 = vadd.f32 %v1031, %v1032
        %v1034 = vmul.f32 %v1024, 0.001953125
        %v1035 = vmul.f32 %v1033, 0.001953125
        %v1036 = vmul.f32 %v1034, %v1034
        %v1037 = vsub.f32 %v1035, %v1036
        %v1038 = vadd.f32 %v1037, 1e-05
        %v1039 = vrsqrt.pop %v1038
        %v1040 = vmul.f32 %v811, %v1039
        %v1041 = vmul.f32 %v1034, %v1040
        %v1042 = vsub.f32 %v813, %v1041
        %v1043 = vsel %vm830, %v851, %v880
        %vm1044 = vcmask 1043456
        %v1045 = vsel %vm1044, %v1043, %v907
        %vm1046 = vcmask 1045504
        %v1047 = vsel %vm1046, %v1045, %v934
        %v1048 = vsel %vm830, %v957, %v986
        %v1049 = vsel %vm1044, %v1048, %v1013
        %v1050 = vsel %vm1046, %v1049, %v1040
        %v1051 = vsel %vm830, %v853, %v882
        %v1052 = vsel %vm1044, %v1051, %v909
        %v1053 = vsel %vm1046, %v1052, %v936
        %v1054 = vsel %vm830, %v959, %v988
        %v1055 = vsel %vm1044, %v1054, %v1015
        %v1056 = vsel %vm1046, %v1055, %v1042
        %1058 = vset.pattern.permute.xlu0 0
        %1059 = vperm.xlu0 %1058, %v1047
        %v1060 = vpop.permute.xlu0 %1059
        %1063 = vset.pattern.permute.xlu0 0
        %1064 = vperm.xlu0 %1063, %v1050
        %v1065 = vpop.permute.xlu0 %1064
        %v1067 = vmul.f32 %v759, %v1060
        %v1068 = vmul.f32 %v761, %v1060
        %v1069 = vmul.f32 %v763, %v1065
        %v1070 = vmul.f32 %v765, %v1065
        %1072 = vset.pattern.permute.xlu0 0
        %1073 = vperm.xlu0 %1072, %v1053
        %v1074 = vpop.permute.xlu0 %1073
        %1077 = vset.pattern.permute.xlu0 0
        %1078 = vperm.xlu0 %1077, %v1056
        %v1079 = vpop.permute.xlu0 %1078
        %v1081 = vadd.f32 %v1067, %v1074
        %v1082 = vadd.f32 %v1068, %v1074
        %v1083 = vadd.f32 %v1069, %v1079
        %v1084 = vadd.f32 %v1070, %v1079
        %vm1085 = vcmp.gt.f32.partialorder %v1081, 0.0
        %vm1086 = vcmp.gt.f32.partialorder %v1082, 0.0
        %vm1087 = vcmp.gt.f32.partialorder %v1083, 0.0
        %vm1088 = vcmp.gt.f32.partialorder %v1084, 0.0
        %v1089 = vmul.f32 %v1081, 1.442695
        %v1090 = vpow.pop %v1089
        %v1091 = vmul.f32 %v1082, 1.442695
        %v1092 = vpow.pop %v1091
        %v1093 = vmul.f32 %v1083, 1.442695
        %v1094 = vpow.pop %v1093
        %v1095 = vmul.f32 %v1084, 1.442695
        %v1096 = vpow.pop %v1095
        %v1097 = vsub.f32 %v1090, 1.0
        %v1098 = vsub.f32 %v1092, 1.0
        %v1099 = vsub.f32 %v1094, 1.0
        %v1100 = vsub.f32 %v1096, 1.0
        %v1101 = vsel %vm1085, %v1081, %v1097
        %v1102 = vsel %vm1086, %v1082, %v1098
        %v1103 = vsel %vm1087, %v1083, %v1099
        %v1104 = vsel %vm1088, %v1084, %v1100
        %1105 = vst [vmem:[%s270] sm:$0xff] %v1101
        %1106 = vst [vmem:[%s270 + $0x8] sm:$0xff] %v1102
        %1107 = vst [vmem:[%s270 + $0x10] sm:$0xff] %v1103
        %1108 = vst [vmem:[%s270 + $0x18] sm:$0xff] %v1104
        %v1109 = vadd.f32 %v802, %v804
        %1110 = vadd.xlane.f32.xlu0 %v1109
        %v1111 = vpop.xlane.xlu0 %1110
        %v1112 = vadd.f32 %v806, %v808
        %1113 = vadd.xlane.f32.xlu0 %v1112
        %v1114 = vpop.xlane.xlu0 %1113
        %v1115 = vmul.f32 %v802, %v802
        %v1116 = vmul.f32 %v804, %v804
        %v1117 = vmul.f32 %v806, %v806
        %v1118 = vmul.f32 %v808, %v808
        %v1119 = vadd.f32 %v1115, %v1116
        %1120 = vadd.xlane.f32.xlu0 %v1119
        %v1121 = vpop.xlane.xlu0 %1120
        %v1122 = vadd.f32 %v1117, %v1118
        %1123 = vadd.xlane.f32.xlu0 %v1122
        %v1124 = vpop.xlane.xlu0 %1123
        %v1125 = vsel %vm830, %v1111, 0.0
        %v1126 = vrot.slane %v1125, 4
        %v1127 = vadd.f32 %v1125, %v1126
        %v1128 = vrot.slane %v1127, 2
        %v1129 = vadd.f32 %v1127, %v1128
        %v1130 = vrot.slane %v1129, 1
        %v1131 = vadd.f32 %v1129, %v1130
        %v1132 = vsel %vm830, %v1121, 0.0
        %v1133 = vrot.slane %v1132, 4
        %v1134 = vadd.f32 %v1132, %v1133
        %v1135 = vrot.slane %v1134, 2
        %v1136 = vadd.f32 %v1134, %v1135
        %v1137 = vrot.slane %v1136, 1
        %v1138 = vadd.f32 %v1136, %v1137
        %v1139 = vmul.f32 %v1131, 0.001953125
        %v1140 = vmul.f32 %v1138, 0.001953125
        %v1141 = vmul.f32 %v1139, %v1139
        %v1142 = vsub.f32 %v1140, %v1141
        %v1143 = vadd.f32 %v1142, 1e-05
        %v1144 = vrsqrt.pop %v1143
        %v1145 = vmul.f32 %v810, %v1144
        %v1146 = vmul.f32 %v1139, %v1145
        %v1147 = vsub.f32 %v812, %v1146
        %v1149 = vrot.slane %v1111, 2
        %v1151 = vsel %vm830, %v1149, 0.0
        %v1152 = vrot.slane %v1151, 4
        %v1153 = vadd.f32 %v1151, %v1152
        %v1154 = vrot.slane %v1153, 2
        %v1155 = vadd.f32 %v1153, %v1154
        %v1156 = vrot.slane %v1155, 1
        %v1157 = vadd.f32 %v1155, %v1156
        %v1159 = vrot.slane %v1121, 2
        %v1161 = vsel %vm830, %v1159, 0.0
        %v1162 = vrot.slane %v1161, 4
        %v1163 = vadd.f32 %v1161, %v1162
        %v1164 = vrot.slane %v1163, 2
        %v1165 = vadd.f32 %v1163, %v1164
        %v1166 = vrot.slane %v1165, 1
        %v1167 = vadd.f32 %v1165, %v1166
        %v1168 = vmul.f32 %v1157, 0.001953125
        %v1169 = vmul.f32 %v1167, 0.001953125
        %v1170 = vmul.f32 %v1168, %v1168
        %v1171 = vsub.f32 %v1169, %v1170
        %v1172 = vadd.f32 %v1171, 1e-05
        %v1173 = vrsqrt.pop %v1172
        %v1174 = vmul.f32 %v810, %v1173
        %v1175 = vmul.f32 %v1168, %v1174
        %v1176 = vsub.f32 %v812, %v1175
        %v1177 = vrot.slane %v1111, 4
        %v1179 = vsel %vm830, %v1177, 0.0
        %v1180 = vrot.slane %v1179, 4
        %v1181 = vadd.f32 %v1179, %v1180
        %v1182 = vrot.slane %v1181, 2
        %v1183 = vadd.f32 %v1181, %v1182
        %v1184 = vrot.slane %v1183, 1
        %v1185 = vadd.f32 %v1183, %v1184
        %v1186 = vrot.slane %v1121, 4
        %v1188 = vsel %vm830, %v1186, 0.0
        %v1189 = vrot.slane %v1188, 4
        %v1190 = vadd.f32 %v1188, %v1189
        %v1191 = vrot.slane %v1190, 2
        %v1192 = vadd.f32 %v1190, %v1191
        %v1193 = vrot.slane %v1192, 1
        %v1194 = vadd.f32 %v1192, %v1193
        %v1195 = vmul.f32 %v1185, 0.001953125
        %v1196 = vmul.f32 %v1194, 0.001953125
        %v1197 = vmul.f32 %v1195, %v1195
        %v1198 = vsub.f32 %v1196, %v1197
        %v1199 = vadd.f32 %v1198, 1e-05
        %v1200 = vrsqrt.pop %v1199
        %v1201 = vmul.f32 %v810, %v1200
        %v1202 = vmul.f32 %v1195, %v1201
        %v1203 = vsub.f32 %v812, %v1202
        %v1204 = vrot.slane %v1111, 6
        %v1206 = vsel %vm830, %v1204, 0.0
        %v1207 = vrot.slane %v1206, 4
        %v1208 = vadd.f32 %v1206, %v1207
        %v1209 = vrot.slane %v1208, 2
        %v1210 = vadd.f32 %v1208, %v1209
        %v1211 = vrot.slane %v1210, 1
        %v1212 = vadd.f32 %v1210, %v1211
        %v1213 = vrot.slane %v1121, 6
        %v1215 = vsel %vm830, %v1213, 0.0
        %v1216 = vrot.slane %v1215, 4
        %v1217 = vadd.f32 %v1215, %v1216
        %v1218 = vrot.slane %v1217, 2
        %v1219 = vadd.f32 %v1217, %v1218
        %v1220 = vrot.slane %v1219, 1
        %v1221 = vadd.f32 %v1219, %v1220
        %v1222 = vmul.f32 %v1212, 0.001953125
        %v1223 = vmul.f32 %v1221, 0.001953125
        %v1224 = vmul.f32 %v1222, %v1222
        %v1225 = vsub.f32 %v1223, %v1224
        %v1226 = vadd.f32 %v1225, 1e-05
        %v1227 = vrsqrt.pop %v1226
        %v1228 = vmul.f32 %v810, %v1227
        %v1229 = vmul.f32 %v1222, %v1228
        %v1230 = vsub.f32 %v812, %v1229
        %v1231 = vsel %vm830, %v1114, 0.0
        %v1232 = vrot.slane %v1231, 4
        %v1233 = vadd.f32 %v1231, %v1232
        %v1234 = vrot.slane %v1233, 2
        %v1235 = vadd.f32 %v1233, %v1234
        %v1236 = vrot.slane %v1235, 1
        %v1237 = vadd.f32 %v1235, %v1236
        %v1238 = vsel %vm830, %v1124, 0.0
        %v1239 = vrot.slane %v1238, 4
        %v1240 = vadd.f32 %v1238, %v1239
        %v1241 = vrot.slane %v1240, 2
        %v1242 = vadd.f32 %v1240, %v1241
        %v1243 = vrot.slane %v1242, 1
        %v1244 = vadd.f32 %v1242, %v1243
        %v1245 = vmul.f32 %v1237, 0.001953125
        %v1246 = vmul.f32 %v1244, 0.001953125
        %v1247 = vmul.f32 %v1245, %v1245
        %v1248 = vsub.f32 %v1246, %v1247
        %v1249 = vadd.f32 %v1248, 1e-05
        %v1250 = vrsqrt.pop %v1249
        %v1251 = vmul.f32 %v811, %v1250
        %v1252 = vmul.f32 %v1245, %v1251
        %v1253 = vsub.f32 %v813, %v1252
        %v1255 = vrot.slane %v1114, 2
        %v1257 = vsel %vm830, %v1255, 0.0
        %v1258 = vrot.slane %v1257, 4
        %v1259 = vadd.f32 %v1257, %v1258
        %v1260 = vrot.slane %v1259, 2
        %v1261 = vadd.f32 %v1259, %v1260
        %v1262 = vrot.slane %v1261, 1
        %v1263 = vadd.f32 %v1261, %v1262
        %v1265 = vrot.slane %v1124, 2
        %v1267 = vsel %vm830, %v1265, 0.0
        %v1268 = vrot.slane %v1267, 4
        %v1269 = vadd.f32 %v1267, %v1268
        %v1270 = vrot.slane %v1269, 2
        %v1271 = vadd.f32 %v1269, %v1270
        %v1272 = vrot.slane %v1271, 1
        %v1273 = vadd.f32 %v1271, %v1272
        %v1274 = vmul.f32 %v1263, 0.001953125
        %v1275 = vmul.f32 %v1273, 0.001953125
        %v1276 = vmul.f32 %v1274, %v1274
        %v1277 = vsub.f32 %v1275, %v1276
        %v1278 = vadd.f32 %v1277, 1e-05
        %v1279 = vrsqrt.pop %v1278
        %v1280 = vmul.f32 %v811, %v1279
        %v1281 = vmul.f32 %v1274, %v1280
        %v1282 = vsub.f32 %v813, %v1281
        %v1283 = vrot.slane %v1114, 4
        %v1285 = vsel %vm830, %v1283, 0.0
        %v1286 = vrot.slane %v1285, 4
        %v1287 = vadd.f32 %v1285, %v1286
        %v1288 = vrot.slane %v1287, 2
        %v1289 = vadd.f32 %v1287, %v1288
        %v1290 = vrot.slane %v1289, 1
        %v1291 = vadd.f32 %v1289, %v1290
        %v1292 = vrot.slane %v1124, 4
        %v1294 = vsel %vm830, %v1292, 0.0
        %v1295 = vrot.slane %v1294, 4
        %v1296 = vadd.f32 %v1294, %v1295
        %v1297 = vrot.slane %v1296, 2
        %v1298 = vadd.f32 %v1296, %v1297
        %v1299 = vrot.slane %v1298, 1
        %v1300 = vadd.f32 %v1298, %v1299
        %v1301 = vmul.f32 %v1291, 0.001953125
        %v1302 = vmul.f32 %v1300, 0.001953125
        %v1303 = vmul.f32 %v1301, %v1301
        %v1304 = vsub.f32 %v1302, %v1303
        %v1305 = vadd.f32 %v1304, 1e-05
        %v1306 = vrsqrt.pop %v1305
        %v1307 = vmul.f32 %v811, %v1306
        %v1308 = vmul.f32 %v1301, %v1307
        %v1309 = vsub.f32 %v813, %v1308
        %v1310 = vrot.slane %v1114, 6
        %v1312 = vsel %vm830, %v1310, 0.0
        %v1313 = vrot.slane %v1312, 4
        %v1314 = vadd.f32 %v1312, %v1313
        %v1315 = vrot.slane %v1314, 2
        %v1316 = vadd.f32 %v1314, %v1315
        %v1317 = vrot.slane %v1316, 1
        %v1318 = vadd.f32 %v1316, %v1317
        %v1319 = vrot.slane %v1124, 6
        %v1321 = vsel %vm830, %v1319, 0.0
        %v1322 = vrot.slane %v1321, 4
        %v1323 = vadd.f32 %v1321, %v1322
        %v1324 = vrot.slane %v1323, 2
        %v1325 = vadd.f32 %v1323, %v1324
        %v1326 = vrot.slane %v1325, 1
        %v1327 = vadd.f32 %v1325, %v1326
        %v1328 = vmul.f32 %v1318, 0.001953125
        %v1329 = vmul.f32 %v1327, 0.001953125
        %v1330 = vmul.f32 %v1328, %v1328
        %v1331 = vsub.f32 %v1329, %v1330
        %v1332 = vadd.f32 %v1331, 1e-05
        %v1333 = vrsqrt.pop %v1332
        %v1334 = vmul.f32 %v811, %v1333
        %v1335 = vmul.f32 %v1328, %v1334
        %v1336 = vsub.f32 %v813, %v1335
        %v1337 = vsel %vm830, %v1145, %v1174
        %v1338 = vsel %vm1044, %v1337, %v1201
        %v1339 = vsel %vm1046, %v1338, %v1228
        %v1340 = vsel %vm830, %v1251, %v1280
        %v1341 = vsel %vm1044, %v1340, %v1307
        %v1342 = vsel %vm1046, %v1341, %v1334
        %v1343 = vsel %vm830, %v1147, %v1176
        %v1344 = vsel %vm1044, %v1343, %v1203
        %v1345 = vsel %vm1046, %v1344, %v1230
        %v1346 = vsel %vm830, %v1253, %v1282
        %v1347 = vsel %vm1044, %v1346, %v1309
        %v1348 = vsel %vm1046, %v1347, %v1336
        %1350 = vset.pattern.permute.xlu0 0
        %1351 = vperm.xlu0 %1350, %v1339
        %v1352 = vpop.permute.xlu0 %1351
        %1355 = vset.pattern.permute.xlu0 0
        %1356 = vperm.xlu0 %1355, %v1342
        %v1357 = vpop.permute.xlu0 %1356
        %v1359 = vmul.f32 %v802, %v1352
        %v1360 = vmul.f32 %v804, %v1352
        %v1361 = vmul.f32 %v806, %v1357
        %v1362 = vmul.f32 %v808, %v1357
        %1364 = vset.pattern.permute.xlu0 0
        %1365 = vperm.xlu0 %1364, %v1345
        %v1366 = vpop.permute.xlu0 %1365
        %1369 = vset.pattern.permute.xlu0 0
        %1370 = vperm.xlu0 %1369, %v1348
        %v1371 = vpop.permute.xlu0 %1370
        %v1373 = vadd.f32 %v1359, %v1366
        %v1374 = vadd.f32 %v1360, %v1366
        %v1375 = vadd.f32 %v1361, %v1371
        %v1376 = vadd.f32 %v1362, %v1371
        %vm1377 = vcmp.gt.f32.partialorder %v1373, 0.0
        %vm1378 = vcmp.gt.f32.partialorder %v1374, 0.0
        %vm1379 = vcmp.gt.f32.partialorder %v1375, 0.0
        %vm1380 = vcmp.gt.f32.partialorder %v1376, 0.0
        %v1381 = vmul.f32 %v1373, 1.442695
        %v1382 = vpow.pop %v1381
        %v1383 = vmul.f32 %v1374, 1.442695
        %v1384 = vpow.pop %v1383
        %v1385 = vmul.f32 %v1375, 1.442695
        %v1386 = vpow.pop %v1385
        %v1387 = vmul.f32 %v1376, 1.442695
        %v1388 = vpow.pop %v1387
        %v1389 = vsub.f32 %v1382, 1.0
        %v1390 = vsub.f32 %v1384, 1.0
        %v1391 = vsub.f32 %v1386, 1.0
        %v1392 = vsub.f32 %v1388, 1.0
        %v1393 = vsel %vm1377, %v1373, %v1389
        %v1394 = vsel %vm1378, %v1374, %v1390
        %v1395 = vsel %vm1379, %v1375, %v1391
        %v1396 = vsel %vm1380, %v1376, %v1392
        %s1397 = scalar_lea.vmem %s270, 32 [#allocation5]
        %1398 = vst [vmem:[%s1397] sm:$0xff] %v1393
        %1399 = vst [vmem:[%s1397 + $0x8] sm:$0xff] %v1394
        %1400 = vst [vmem:[%s1397 + $0x10] sm:$0xff] %v1395
        %1401 = vst [vmem:[%s1397 + $0x18] sm:$0xff] %v1396
        %s1402 = sand.u32 %s162, 1
        %s1403 = scalar_lea.sflag [#allocation4], %s1402
        %s1404 = sand.u32 %s162, 1
        %s1405 = smul.addr %s1404, 64
        %s1406 = scalar_lea.vmem [#allocation5], %s1405
        // Predicated region
        $region49: #{tpu_custom_call.1} parent=43 // pred_check
          %p1407 = pneg %p172
        $region50: #{tpu_custom_call.1} parent=43 // pred_check_branch
          %1409 = sbr.rel (%p1407) target = $region52
        $region51: #{tpu_custom_call.1} parent=43 // pred_region
          %s1410 = smul.u32 2, %s23
          %s1412 = ssub.s32 1024, 1024
          %1413 = vsyncadd %s1403, %s1412
          %s1414 = smul.addr %s1410, 4
          %s1415 = smul.addr %s1414, 128
          %s1416 = scalar_lea.hbm %s6, %s1415
          %s1417 = sshll.u32 %s1406, 4
          %s1418 = int_to_ptr.vmem [resolvable:$true] %s1417
          %1423 = dma.vmem_to_hbm [thread:$0]  %s1418, 1024, %s1416, %s1403, 256, 256, 16
        $region52: #{tpu_custom_call.1} parent=43 // pred_fallthru
          _
      $region44: #{tpu_custom_call.1} parent=5 // pred_fallthru
        _
      %p1424 = scmp.le.s32.totalorder 2, %s18
      // Predicated region
      $region53: #{tpu_custom_call.1} parent=5 // pred_check
        %p1425 = pneg %p1424
      $region54: #{tpu_custom_call.1} parent=5 // pred_check_branch
        %1427 = sbr.rel (%p1425) target = $region56
      $region55: #{tpu_custom_call.1} parent=5 // pred_region
        %s1428 = ssub.s32 %s18, 2
        // Predicated region
        $region57: #{tpu_custom_call.1} parent=55 // pred_check
          %p1429 = pneg %p178
        $region58: #{tpu_custom_call.1} parent=55 // pred_check_branch
          %1431 = sbr.rel (%p1429) target = $region60
        $region59: #{tpu_custom_call.1} parent=55 // pred_region
          %s1432 = sand.u32 %s163, 1
          %s1433 = scalar_lea.sflag [#allocation4], %s1432
          %s1434 = sand.u32 %s163, 1
          %s1435 = smul.addr %s1434, 64
          %s1436 = scalar_lea.vmem [#allocation5], %s1435
          %1437 = dma.done %s1433, 1024
        $region60: #{tpu_custom_call.1} parent=55 // pred_fallthru
          _
      $region56: #{tpu_custom_call.1} parent=5 // pred_fallthru
        _
    $region6: #{tpu_custom_call.1} parent=1 // loop_footer
      %s22 = sadd.s32 1, %s18
    $region7: #{tpu_custom_call.1} parent=1 // loop_footer_branch
      %17 = sbr.rel target = $region3
    $region8: #{tpu_custom_call.1} parent=1 // loop_exit
      _
    %1438 = vsyncpa [#allocation3], 1
    %s1439 = scalar_lea.sflag [#allocation3], 1
    %1440 = vsyncpa %s1439, 1
    %1441 = vsyncpa [#allocation4], 1
    %s1442 = scalar_lea.sflag [#allocation4], 1
    %1443 = vsyncpa %s1442, 1

</llo_original>
